<compile_context>
chip_gen: v7x
topology: tpu7x:2x2x1
jax: 0.10.0
libtpu: 0.0.40
codegen_flags: <defaults>
</compile_context>

<pallas_src>
from functools import partial

import jax
import jax.numpy as jnp
import numpy as np
from jax.experimental import pallas as pl
from jax.experimental.pallas import tpu as pltpu


def _attn_pool_kernel(x_ref, w_ref, b_ref, s_ref, o_ref, *,
                      taps: int, pad: int, mult: int, l_in: int, l_out: int,
                      bt: int, dot_precision):
    # x_ref: (bt, C, L)           input tile, native PyTorch layout (L on lanes)
    # w_ref: (C, mult*K)          w_ref[g, j*K + k] = weight[g*mult + j, 0, k]
    # b_ref: (C, mult)            b_ref[g, j]       = bias[g*mult + j]
    # s_ref: (L, L_out) f32       0/1 down-sample matrix: S[u, t] = (u == t*stride)
    # o_ref: (bt, C, mult*L_out)  out[:, g, j*L_out + t] == conv channel g*mult+j
    sel = s_ref[...]                                  # hoisted out of the loops
    w = w_ref[...].astype(jnp.float32)
    bias = b_ref[...].astype(jnp.float32)

    # Edge masks implementing padding_mode='zeros' (shared across batch rows).
    lane = jax.lax.broadcasted_iota(jnp.int32, (1, l_in), 1)
    masks = []
    for k in range(taps):
        d = k - pad
        if d == 0:
            masks.append(None)
        else:
            masks.append(jnp.logical_and(lane + d >= 0, lane + d < l_in))

    for b in range(bt):                    # static unroll over the batch tile
        xb = x_ref[b].astype(jnp.float32)  # (C, L): single load of the row
        # Tap views of xb: one roll (XLU) + masked select per tap, no strided
        # slices and no materialized padded copy.
        tap_vals = []
        for k in range(taps):
            d = k - pad
            if d == 0:
                tap_vals.append(xb)
            else:
                rolled = pltpu.roll(xb, (-d) % l_in, 1)
                tap_vals.append(jnp.where(masks[k], rolled, 0.0))
        for j in range(mult):              # output-channel group of this input ch.
            col = j * taps
            y = tap_vals[0] * w[:, col:col + 1]
            for k in range(1, taps):
                y = y + tap_vals[k] * w[:, col + k:col + k + 1]
            # Stride-s down-sample along lanes: exact 0/1 selection on the MXU.
            out = jnp.dot(y, sel, preferred_element_type=jnp.float32,
                          precision=dot_precision)
            out = out + bias[:, j:j + 1]
            o_ref[b, :, j * l_out:(j + 1) * l_out] = out.astype(o_ref.dtype)


def attn_pooling_forward(x, conv_weight, conv_bias, *, stride: int):
    """attn_pooling.forward: grouped Conv1d with groups == in_feature.

    x: (B, C_in, L); conv_weight: (C_out, 1, K) torch layout; conv_bias: (C_out,).
    Returns (B, C_out, L_out).
    """
    B, C_in, L = x.shape
    C_out, in_per_group, K = conv_weight.shape
    assert in_per_group == 1, "attn_pooling uses groups == in_feature"
    assert C_out % C_in == 0
    assert K == stride + 1
    mult = C_out // C_in
    pad = stride // 2
    L_out = (L + 2 * pad - K) // stride + 1
    assert L_out >= 1

    # Re-group the (tiny) parameters only; x itself is never touched in HBM.
    # Conv1d group g (input channel g) owns output channels g*mult .. g*mult+mult-1.
    w2 = conv_weight[:, 0, :].reshape(C_in, mult * K)           # [g, j*K + k]
    b2 = conv_bias.reshape(C_in, mult)                          # [g, j]
    # 0/1 selection matrix for the stride-s lane down-sample (u == t*stride).
    sel = (jnp.arange(L, dtype=jnp.int32)[:, None]
           == (stride * jnp.arange(L_out, dtype=jnp.int32))[None, :]
           ).astype(jnp.float32)

    itemsize = x.dtype.itemsize
    try:
        vmem_cap = int(pltpu.get_tpu_info().vmem_capacity_bytes)
    except Exception:
        vmem_cap = 64 * 1024 * 1024        # conservative (v7x per-TC) fallback

    # Double-buffered in/out tile bytes per batch row + the grid-invariant
    # operands (weights / bias / selection matrix).
    per_row = 2 * C_in * (L + mult * L_out) * itemsize
    fixed = 2 * (w2.size * w2.dtype.itemsize + b2.size * b2.dtype.itemsize
                 + sel.size * 4)
    budget = max(vmem_cap // 4 - fixed, per_row)
    bt = max(1, min(budget // per_row, B, 32))
    if B >= 2:                              # keep >=2 grid steps (dual-TC / megacore)
        bt = min(bt, -(-B // 2))
    bt = int(bt)
    grid = (pl.cdiv(B, bt),)

    # f32 working set of one batch row inside the kernel (taps + y + out).
    temp = (K + 3) * C_in * max(L, mult * L_out) * 4
    needed = fixed + bt * per_row + temp
    vmem_limit = int(min(max(2 * needed, 16 * 1024 * 1024), (vmem_cap * 9) // 10))

    flops = int(2 * B * mult * C_in * L * L_out            # selection matmuls
                + 2 * B * C_in * L * K * (mult + 1))       # taps + FMAs
    bytes_accessed = int(itemsize * (x.size + B * C_out * L_out)
                         + w2.size * w2.dtype.itemsize
                         + b2.size * b2.dtype.itemsize + 4 * sel.size)

    def _call(dot_precision):
        kernel = partial(_attn_pool_kernel, taps=K, pad=pad, mult=mult,
                         l_in=L, l_out=L_out, bt=bt, dot_precision=dot_precision)
        return pl.pallas_call(
            kernel,
            out_shape=jax.ShapeDtypeStruct((B, C_in, mult * L_out), x.dtype),
            grid_spec=pltpu.PrefetchScalarGridSpec(
                num_scalar_prefetch=0,
                grid=grid,
                in_specs=[
                    pl.BlockSpec((bt, C_in, L), lambda i: (i, 0, 0)),
                    pl.BlockSpec((C_in, mult * K), lambda i: (0, 0)),
                    pl.BlockSpec((C_in, mult), lambda i: (0, 0)),
                    pl.BlockSpec((L, L_out), lambda i: (0, 0)),
                ],
                out_specs=pl.BlockSpec((bt, C_in, mult * L_out),
                                       lambda i: (i, 0, 0)),
            ),
            compiler_params=pltpu.CompilerParams(
                dimension_semantics=("parallel",),
                vmem_limit_bytes=vmem_limit),
            cost_estimate=pl.CostEstimate(flops=flops, transcendentals=0,
                                          bytes_accessed=bytes_accessed),
        )(x, w2, b2, sel)

    try:
        # Full-f32 selection matmul (0/1 matrix -> exact pick of y's columns).
        out = _call(jax.lax.Precision.HIGHEST)
    except Exception:
        # Fall back if this jax build rejects an explicit dot precision in Pallas.
        out = _call(None)

    # (B, C_in, mult*L_out) -> (B, C_out, L_out): adjacent-dim split/merge only,
    # i.e. a layout-preserving (free) reshape -- no extra HBM pass.
    return out.reshape(B, C_out, L_out)


def attn_pooling_reference(x, conv_weight, conv_bias, *, stride: int):
    """Pure-JAX reference mirroring nn.Conv1d(groups=in_feature)."""
    pad = stride // 2
    out = jax.lax.conv_general_dilated(
        x, conv_weight,
        window_strides=(stride,),
        padding=[(pad, pad)],
        dimension_numbers=("NCH", "OIH", "NCH"),
        feature_group_count=x.shape[1],
        precision=jax.lax.Precision.HIGHEST)
    return out + conv_bias[None, :, None]


if __name__ == "__main__":
    key = jax.random.PRNGKey(0)

    def _init(k, c_in, c_out, ksize):
        kw, kb = jax.random.split(k)
        bound = 1.0 / np.sqrt(ksize)   # Conv1d init: sqrt(groups/(in_ch*K)) = 1/sqrt(K)
        w = jax.random.uniform(kw, (c_out, 1, ksize), minval=-bound,
                               maxval=bound, dtype=jnp.float32)
        b = jax.random.uniform(kb, (c_out,), minval=-bound, maxval=bound,
                               dtype=jnp.float32)
        return w, b

    k1, k2, kx1, kx2 = jax.random.split(key, 4)

    # Case 1: depthwise (out_feature == in_feature), stride=2 -> K=3, pad=1.
    B, C, L, stride = 2, 32, 16, 2
    x = jax.random.normal(kx1, (B, C, L), dtype=jnp.float32)
    w, b = _init(k1, C, C, stride + 1)
    out = jax.block_until_ready(attn_pooling_forward(x, w, b, stride=stride))
    ref = attn_pooling_reference(x, w, b, stride=stride)
    np.testing.assert_allclose(np.asarray(out), np.asarray(ref),
                               rtol=1e-5, atol=1e-5)

    # Case 2: out_feature = 2 * in_feature, stride=3 -> K=4, pad=1 (no jnp.repeat).
    B2, Ci2, Co2, L2, stride2 = 4, 16, 32, 20, 3
    x2 = jax.random.normal(kx2, (B2, Ci2, L2), dtype=jnp.float32)
    w2_, b2_ = _init(k2, Ci2, Co2, stride2 + 1)
    out2 = jax.block_until_ready(attn_pooling_forward(x2, w2_, b2_, stride=stride2))
    ref2 = attn_pooling_reference(x2, w2_, b2_, stride=stride2)
    np.testing.assert_allclose(np.asarray(out2), np.asarray(ref2),
                               rtol=1e-5, atol=1e-5)

    print("KERNEL_OK")
</pallas_src>

<mosaic_0001>
module attributes {stable_mosaic.version = 11 : i64} {
  func.func @_attn_pool_kernel(%arg0: i32, %arg1: memref<1x32x16xf32, #tpu.memory_space<vmem>>, %arg2: memref<32x3xf32, #tpu.memory_space<vmem>>, %arg3: memref<32x1xf32, #tpu.memory_space<vmem>>, %arg4: memref<16x8xf32, #tpu.memory_space<vmem>>, %arg5: memref<1x32x8xf32, #tpu.memory_space<vmem>>) attributes {dimension_semantics = [#tpu.dimension_semantics<parallel>], iteration_bounds = array<i64: 2>, scalar_prefetch = 0 : i64, scratch_operands = 0 : i64, tpu.core_type = #tpu.core_type<tc>, window_params = [{transform_indices = @transform_0, window_bounds = array<i64: 1, 32, 16>}, {pipeline_mode = #tpu.pipeline_mode<synchronous>, transform_indices = @transform_1, window_bounds = array<i64: 32, 3>}, {pipeline_mode = #tpu.pipeline_mode<synchronous>, transform_indices = @transform_2, window_bounds = array<i64: 32, 1>}, {pipeline_mode = #tpu.pipeline_mode<synchronous>, transform_indices = @transform_3, window_bounds = array<i64: 16, 8>}, {transform_indices = @transform_4, window_bounds = array<i64: 1, 32, 8>}]} {
    %c0 = arith.constant 0 : index
    %c0_0 = arith.constant 0 : index
    %0 = vector.load %arg4[%c0, %c0_0] : memref<16x8xf32, #tpu.memory_space<vmem>>, vector<16x8xf32>
    %c0_1 = arith.constant 0 : index
    %c0_2 = arith.constant 0 : index
    %1 = vector.load %arg2[%c0_1, %c0_2] : memref<32x3xf32, #tpu.memory_space<vmem>>, vector<32x3xf32>
    %c0_3 = arith.constant 0 : index
    %c0_4 = arith.constant 0 : index
    %2 = vector.load %arg3[%c0_3, %c0_4] : memref<32x1xf32, #tpu.memory_space<vmem>>, vector<32x1xf32>
    %3 = tpu.iota {dimensions = array<i32: 1>} : vector<1x16xi32>
    %c-1_i32 = arith.constant -1 : i32
    %4 = vector.broadcast %c-1_i32 : i32 to vector<1x16xi32>
    %5 = arith.addi %3, %4 : vector<1x16xi32>
    %c0_i32 = arith.constant 0 : i32
    %6 = vector.broadcast %c0_i32 : i32 to vector<1x16xi32>
    %7 = arith.cmpi sge, %5, %6 : vector<1x16xi32>
    %c-1_i32_5 = arith.constant -1 : i32
    %8 = vector.broadcast %c-1_i32_5 : i32 to vector<1x16xi32>
    %9 = arith.addi %3, %8 : vector<1x16xi32>
    %c16_i32 = arith.constant 16 : i32
    %10 = vector.broadcast %c16_i32 : i32 to vector<1x16xi32>
    %11 = arith.cmpi slt, %9, %10 : vector<1x16xi32>
    %12 = arith.andi %7, %11 : vector<1x16xi1>
    %c1_i32 = arith.constant 1 : i32
    %13 = vector.broadcast %c1_i32 : i32 to vector<1x16xi32>
    %14 = arith.addi %3, %13 : vector<1x16xi32>
    %c0_i32_6 = arith.constant 0 : i32
    %15 = vector.broadcast %c0_i32_6 : i32 to vector<1x16xi32>
    %16 = arith.cmpi sge, %14, %15 : vector<1x16xi32>
    %c1_i32_7 = arith.constant 1 : i32
    %17 = vector.broadcast %c1_i32_7 : i32 to vector<1x16xi32>
    %18 = arith.addi %3, %17 : vector<1x16xi32>
    %c16_i32_8 = arith.constant 16 : i32
    %19 = vector.broadcast %c16_i32_8 : i32 to vector<1x16xi32>
    %20 = arith.cmpi slt, %18, %19 : vector<1x16xi32>
    %21 = arith.andi %16, %20 : vector<1x16xi1>
    %c0_9 = arith.constant 0 : index
    %c0_10 = arith.constant 0 : index
    %c0_11 = arith.constant 0 : index
    %22 = vector.load %arg1[%c0_9, %c0_10, %c0_11] : memref<1x32x16xf32, #tpu.memory_space<vmem>>, vector<1x32x16xf32>
    %23 = vector.shape_cast %22 : vector<1x32x16xf32> to vector<32x16xf32>
    %c1_i32_12 = arith.constant 1 : i32
    %24 = tpu.dynamic_rotate %23 by %c1_i32_12 dim 1 : vector<32x16xf32>, i32 -> vector<32x16xf32>
    %cst = arith.constant 0.000000e+00 : f32
    %25 = vector.shape_cast %12 : vector<1x16xi1> to vector<1x16xi1>
    %26 = vector.broadcast %25 : vector<1x16xi1> to vector<32x16xi1>
    %27 = vector.broadcast %cst : f32 to vector<32x16xf32>
    %28 = arith.select %26, %24, %27 : vector<32x16xi1>, vector<32x16xf32>
    %c15_i32 = arith.constant 15 : i32
    %29 = tpu.dynamic_rotate %23 by %c15_i32 dim 1 : vector<32x16xf32>, i32 -> vector<32x16xf32>
    %cst_13 = arith.constant 0.000000e+00 : f32
    %30 = vector.shape_cast %21 : vector<1x16xi1> to vector<1x16xi1>
    %31 = vector.broadcast %30 : vector<1x16xi1> to vector<32x16xi1>
    %32 = vector.broadcast %cst_13 : f32 to vector<32x16xf32>
    %33 = arith.select %31, %29, %32 : vector<32x16xi1>, vector<32x16xf32>
    %34 = vector.extract_strided_slice %1 {offsets = [0, 0], sizes = [32, 1], strides = [1, 1]} : vector<32x3xf32> to vector<32x1xf32>
    %35 = vector.broadcast %34 : vector<32x1xf32> to vector<32x16xf32>
    %36 = arith.mulf %28, %35 : vector<32x16xf32>
    %37 = vector.extract_strided_slice %1 {offsets = [0, 1], sizes = [32, 1], strides = [1, 1]} : vector<32x3xf32> to vector<32x1xf32>
    %38 = vector.broadcast %37 : vector<32x1xf32> to vector<32x16xf32>
    %39 = arith.mulf %23, %38 : vector<32x16xf32>
    %40 = arith.addf %36, %39 : vector<32x16xf32>
    %41 = vector.extract_strided_slice %1 {offsets = [0, 2], sizes = [32, 1], strides = [1, 1]} : vector<32x3xf32> to vector<32x1xf32>
    %42 = vector.broadcast %41 : vector<32x1xf32> to vector<32x16xf32>
    %43 = arith.mulf %33, %42 : vector<32x16xf32>
    %44 = arith.addf %40, %43 : vector<32x16xf32>
    %cst_14 = arith.constant dense<0.000000e+00> : vector<32x8xf32>
    %45 = tpu.matmul %44, %0, %cst_14 {dimension_numbers = #tpu.dot_dimension_numbers<[1], [0], [0], [1], [0, 0, 1, 1], [], []>, precision = #tpu.contract_precision<fp32>} : vector<32x16xf32>, vector<16x8xf32>, vector<32x8xf32> -> vector<32x8xf32>
    %46 = vector.broadcast %2 : vector<32x1xf32> to vector<32x8xf32>
    %47 = arith.addf %45, %46 : vector<32x8xf32>
    %c0_15 = arith.constant 0 : index
    %c0_16 = arith.constant 0 : index
    %c0_17 = arith.constant 0 : index
    %48 = vector.load %arg5[%c0_15, %c0_16, %c0_17] : memref<1x32x8xf32, #tpu.memory_space<vmem>>, vector<1x32x8xf32>
    %49 = vector.shape_cast %48 : vector<1x32x8xf32> to vector<32x8xf32>
    %50 = vector.shape_cast %47 : vector<32x8xf32> to vector<1x32x8xf32>
    tpu.vector_store %arg5[%c0_15, %c0_16, %c0_17], %50 {strides = array<i32>} : memref<1x32x8xf32, #tpu.memory_space<vmem>>, vector<1x32x8xf32>,
    return
  }
  func.func @transform_0(%arg0: i32) -> (i32, i32, i32) {
    %c0_i32 = arith.constant 0 : i32
    %c0_i32_0 = arith.constant 0 : i32
    %c0_i32_1 = arith.constant 0 : i32
    return %arg0, %c0_i32, %c0_i32_0 : i32, i32, i32
  }
  func.func @transform_1(%arg0: i32) -> (i32, i32) {
    %c0_i32 = arith.constant 0 : i32
    %c0_i32_0 = arith.constant 0 : i32
    %c0_i32_1 = arith.constant 0 : i32
    return %c0_i32, %c0_i32_0 : i32, i32
  }
  func.func @transform_2(%arg0: i32) -> (i32, i32) {
    %c0_i32 = arith.constant 0 : i32
    %c0_i32_0 = arith.constant 0 : i32
    %c0_i32_1 = arith.constant 0 : i32
    return %c0_i32, %c0_i32_0 : i32, i32
  }
  func.func @transform_3(%arg0: i32) -> (i32, i32) {
    %c0_i32 = arith.constant 0 : i32
    %c0_i32_0 = arith.constant 0 : i32
    %c0_i32_1 = arith.constant 0 : i32
    return %c0_i32, %c0_i32_0 : i32, i32
  }
  func.func @transform_4(%arg0: i32) -> (i32, i32, i32) {
    %c0_i32 = arith.constant 0 : i32
    %c0_i32_0 = arith.constant 0 : i32
    %c0_i32_1 = arith.constant 0 : i32
    return %arg0, %c0_i32, %c0_i32_0 : i32, i32, i32
  }
}

module attributes {stable_mosaic.version = 11 : i64} {
  func.func @_attn_pool_kernel(%arg0: i32, %arg1: memref<1x32x16xf32, #tpu.memory_space<vmem>>, %arg2: memref<32x3xf32, #tpu.memory_space<vmem>>, %arg3: memref<32x1xf32, #tpu.memory_space<vmem>>, %arg4: memref<16x8xf32, #tpu.memory_space<vmem>>, %arg5: memref<1x32x8xf32, #tpu.memory_space<vmem>>) attributes {dimension_semantics = [#tpu.dimension_semantics<parallel>], iteration_bounds = array<i64: 2>, scalar_prefetch = 0 : i64, scratch_operands = 0 : i64, tpu.core_type = #tpu.core_type<tc>, window_params = [{transform_indices = @transform_0, window_bounds = array<i64: 1, 32, 16>}, {pipeline_mode = #tpu.pipeline_mode<synchronous>, transform_indices = @transform_1, window_bounds = array<i64: 32, 3>}, {pipeline_mode = #tpu.pipeline_mode<synchronous>, transform_indices = @transform_2, window_bounds = array<i64: 32, 1>}, {pipeline_mode = #tpu.pipeline_mode<synchronous>, transform_indices = @transform_3, window_bounds = array<i64: 16, 8>}, {transform_indices = @transform_4, window_bounds = array<i64: 1, 32, 8>}]} {
    %c0 = arith.constant 0 : index
    %c0_0 = arith.constant 0 : index
    %0 = vector.load %arg4[%c0, %c0_0] : memref<16x8xf32, #tpu.memory_space<vmem>>, vector<16x8xf32>
    %c0_1 = arith.constant 0 : index
    %c0_2 = arith.constant 0 : index
    %1 = vector.load %arg2[%c0_1, %c0_2] : memref<32x3xf32, #tpu.memory_space<vmem>>, vector<32x3xf32>
    %c0_3 = arith.constant 0 : index
    %c0_4 = arith.constant 0 : index
    %2 = vector.load %arg3[%c0_3, %c0_4] : memref<32x1xf32, #tpu.memory_space<vmem>>, vector<32x1xf32>
    %3 = tpu.iota {dimensions = array<i32: 1>} : vector<1x16xi32>
    %c-1_i32 = arith.constant -1 : i32
    %4 = vector.broadcast %c-1_i32 : i32 to vector<1x16xi32>
    %5 = arith.addi %3, %4 : vector<1x16xi32>
    %c0_i32 = arith.constant 0 : i32
    %6 = vector.broadcast %c0_i32 : i32 to vector<1x16xi32>
    %7 = arith.cmpi sge, %5, %6 : vector<1x16xi32>
    %c-1_i32_5 = arith.constant -1 : i32
    %8 = vector.broadcast %c-1_i32_5 : i32 to vector<1x16xi32>
    %9 = arith.addi %3, %8 : vector<1x16xi32>
    %c16_i32 = arith.constant 16 : i32
    %10 = vector.broadcast %c16_i32 : i32 to vector<1x16xi32>
    %11 = arith.cmpi slt, %9, %10 : vector<1x16xi32>
    %12 = arith.andi %7, %11 : vector<1x16xi1>
    %c1_i32 = arith.constant 1 : i32
    %13 = vector.broadcast %c1_i32 : i32 to vector<1x16xi32>
    %14 = arith.addi %3, %13 : vector<1x16xi32>
    %c0_i32_6 = arith.constant 0 : i32
    %15 = vector.broadcast %c0_i32_6 : i32 to vector<1x16xi32>
    %16 = arith.cmpi sge, %14, %15 : vector<1x16xi32>
    %c1_i32_7 = arith.constant 1 : i32
    %17 = vector.broadcast %c1_i32_7 : i32 to vector<1x16xi32>
    %18 = arith.addi %3, %17 : vector<1x16xi32>
    %c16_i32_8 = arith.constant 16 : i32
    %19 = vector.broadcast %c16_i32_8 : i32 to vector<1x16xi32>
    %20 = arith.cmpi slt, %18, %19 : vector<1x16xi32>
    %21 = arith.andi %16, %20 : vector<1x16xi1>
    %c0_9 = arith.constant 0 : index
    %c0_10 = arith.constant 0 : index
    %c0_11 = arith.constant 0 : index
    %22 = vector.load %arg1[%c0_9, %c0_10, %c0_11] : memref<1x32x16xf32, #tpu.memory_space<vmem>>, vector<1x32x16xf32>
    %23 = vector.shape_cast %22 : vector<1x32x16xf32> to vector<32x16xf32>
    %c1_i32_12 = arith.constant 1 : i32
    %24 = tpu.dynamic_rotate %23 by %c1_i32_12 dim 1 : vector<32x16xf32>, i32 -> vector<32x16xf32>
    %cst = arith.constant 0.000000e+00 : f32
    %25 = vector.shape_cast %12 : vector<1x16xi1> to vector<1x16xi1>
    %26 = vector.broadcast %25 : vector<1x16xi1> to vector<32x16xi1>
    %27 = vector.broadcast %cst : f32 to vector<32x16xf32>
    %28 = arith.select %26, %24, %27 : vector<32x16xi1>, vector<32x16xf32>
    %c15_i32 = arith.constant 15 : i32
    %29 = tpu.dynamic_rotate %23 by %c15_i32 dim 1 : vector<32x16xf32>, i32 -> vector<32x16xf32>
    %cst_13 = arith.constant 0.000000e+00 : f32
    %30 = vector.shape_cast %21 : vector<1x16xi1> to vector<1x16xi1>
    %31 = vector.broadcast %30 : vector<1x16xi1> to vector<32x16xi1>
    %32 = vector.broadcast %cst_13 : f32 to vector<32x16xf32>
    %33 = arith.select %31, %29, %32 : vector<32x16xi1>, vector<32x16xf32>
    %34 = vector.extract_strided_slice %1 {offsets = [0, 0], sizes = [32, 1], strides = [1, 1]} : vector<32x3xf32> to vector<32x1xf32>
    %35 = vector.broadcast %34 : vector<32x1xf32> to vector<32x16xf32>
    %36 = arith.mulf %28, %35 : vector<32x16xf32>
    %37 = vector.extract_strided_slice %1 {offsets = [0, 1], sizes = [32, 1], strides = [1, 1]} : vector<32x3xf32> to vector<32x1xf32>
    %38 = vector.broadcast %37 : vector<32x1xf32> to vector<32x16xf32>
    %39 = arith.mulf %23, %38 : vector<32x16xf32>
    %40 = arith.addf %36, %39 : vector<32x16xf32>
    %41 = vector.extract_strided_slice %1 {offsets = [0, 2], sizes = [32, 1], strides = [1, 1]} : vector<32x3xf32> to vector<32x1xf32>
    %42 = vector.broadcast %41 : vector<32x1xf32> to vector<32x16xf32>
    %43 = arith.mulf %33, %42 : vector<32x16xf32>
    %44 = arith.addf %40, %43 : vector<32x16xf32>
    %cst_14 = arith.constant dense<0.000000e+00> : vector<32x8xf32>
    %45 = tpu.matmul %44, %0, %cst_14 {dimension_numbers = #tpu.dot_dimension_numbers<[1], [0], [0], [1], [0, 0, 1, 1], [], []>} : vector<32x16xf32>, vector<16x8xf32>, vector<32x8xf32> -> vector<32x8xf32>
    %46 = vector.broadcast %2 : vector<32x1xf32> to vector<32x8xf32>
    %47 = arith.addf %45, %46 : vector<32x8xf32>
    %c0_15 = arith.constant 0 : index
    %c0_16 = arith.constant 0 : index
    %c0_17 = arith.constant 0 : index
    %48 = vector.load %arg5[%c0_15, %c0_16, %c0_17] : memref<1x32x8xf32, #tpu.memory_space<vmem>>, vector<1x32x8xf32>
    %49 = vector.shape_cast %48 : vector<1x32x8xf32> to vector<32x8xf32>
    %50 = vector.shape_cast %47 : vector<32x8xf32> to vector<1x32x8xf32>
    tpu.vector_store %arg5[%c0_15, %c0_16, %c0_17], %50 {strides = array<i32>} : memref<1x32x8xf32, #tpu.memory_space<vmem>>, vector<1x32x8xf32>,
    return
  }
  func.func @transform_0(%arg0: i32) -> (i32, i32, i32) {
    %c0_i32 = arith.constant 0 : i32
    %c0_i32_0 = arith.constant 0 : i32
    %c0_i32_1 = arith.constant 0 : i32
    return %arg0, %c0_i32, %c0_i32_0 : i32, i32, i32
  }
  func.func @transform_1(%arg0: i32) -> (i32, i32) {
    %c0_i32 = arith.constant 0 : i32
    %c0_i32_0 = arith.constant 0 : i32
    %c0_i32_1 = arith.constant 0 : i32
    return %c0_i32, %c0_i32_0 : i32, i32
  }
  func.func @transform_2(%arg0: i32) -> (i32, i32) {
    %c0_i32 = arith.constant 0 : i32
    %c0_i32_0 = arith.constant 0 : i32
    %c0_i32_1 = arith.constant 0 : i32
    return %c0_i32, %c0_i32_0 : i32, i32
  }
  func.func @transform_3(%arg0: i32) -> (i32, i32) {
    %c0_i32 = arith.constant 0 : i32
    %c0_i32_0 = arith.constant 0 : i32
    %c0_i32_1 = arith.constant 0 : i32
    return %c0_i32, %c0_i32_0 : i32, i32
  }
  func.func @transform_4(%arg0: i32) -> (i32, i32, i32) {
    %c0_i32 = arith.constant 0 : i32
    %c0_i32_0 = arith.constant 0 : i32
    %c0_i32_1 = arith.constant 0 : i32
    return %arg0, %c0_i32, %c0_i32_0 : i32, i32, i32
  }
}

</mosaic_0001>

<llo_original>
// kernel: tpu_custom_call.1
$region0: #{tpu_custom_call.1}
  #allocation0 [shape = 'u32[]', space=smem, size = 0x4, offset = 0x4, fixed_abs, tag = 'smem constant byte address 0x4 - core index']
  #allocation1 [shape = 'u32[144,128]{1,0:T(1,128)}', space=vmem, size = 0x12000, scoped, tag = 'internal scratch']
  %s0 = inlined_call_operand.vmem [shape: f32[2,32,16], index: 0, kind: input, shape index: {}]
  %s1 = inlined_call_operand.vmem [shape: f32[32,3], index: 1, kind: input, shape index: {}]
  %s2 = inlined_call_operand.vmem [shape: f32[32,1], index: 2, kind: input, shape index: {}]
  %s3 = inlined_call_operand.vmem [shape: f32[16,8], index: 3, kind: input, shape index: {}]
  %s4 = inlined_call_operand.vmem [shape: f32[2,32,8], index: 4, kind: output, shape index: {}]
  %s5 = sld [smem:[#allocation0]]
  $region49: #{tpu_custom_call.1} parent=0
    _
  %s7 = ssub.s32 1, %s5
  %s8 = scalar_select 0, %s7, %s5
  loop: start=0, step=1, limit=4
  $region2: #{tpu_custom_call.1} parent=0 // loop_pre_header
    _
  $region3: #{tpu_custom_call.1} parent=0 // loop_header
    %s10 = sphi 0, %s14
    %p11 = scmp.ge.s32.totalorder %s10, 4
    %s20 = sphi 0, %s22
    %s23 = sphi 0, %s20
    %s24 = sphi 0, %s23
    %s40 = sphi 0, %s24
    %s44 = sphi 0, %s44
    %s46 = sphi 0, %s44
    %s47 = sphi 0, %s46
    %s61 = sphi 0, %s47
    %s65 = sphi 0, %s65
    %s67 = sphi 0, %s65
    %s68 = sphi 0, %s67
    %s82 = sphi 0, %s68
    %s86 = sphi 0, %s86
    %s88 = sphi 0, %s86
    %s89 = sphi 0, %s88
    %s103 = sphi 0, %s89
    %s109 = sphi 0, %s111
    %s112 = sphi 0, %s109
    %s113 = sphi 0, %s112
    %s129 = sphi 0, %s113
  $region4: #{tpu_custom_call.1} parent=0 // loop_header_branch
    %13 = sbr.rel (%p11) target = $region8
  $region5: #{tpu_custom_call.1} parent=0 // loop_body
    %s15 = ssub.s32 %s10, 1
    %s16 = ssub.s32 %s10, 2
    %s17 = sadd.s32 %s10, 1
    %s18 = ssub.s32 %s10, %s17
    %p19 = scmp.eq.s32.totalorder %s18, 0
    %s21 = sadd.s32 %s20, 1
    %s22 = scalar_select %p19, %s20, %s21
    %p25 = pneg %p19
    %p26 = scmp.eq.s32.totalorder %s10, 1
    %p27 = por %p25, %p26
    %p28 = scmp.ne.s32.totalorder %s20, %s23
    %p29 = scmp.eq.s32.totalorder %s10, 0
    %p30 = por %p28, %p29
    %p31 = scmp.ne.s32.totalorder %s20, %s23
    %p32 = scmp.eq.s32.totalorder %s15, 1
    %p33 = por %p31, %p32
    %p34 = scmp.ne.s32.totalorder %s23, %s24
    %p35 = scmp.eq.s32.totalorder %s15, 0
    %p36 = por %p34, %p35
    %p37 = scmp.ne.s32.totalorder %s23, %s24
    %p38 = scmp.eq.s32.totalorder %s16, 1
    %p39 = por %p37, %p38
    %p41 = scmp.ne.s32.totalorder %s24, %s40
    %p42 = scmp.eq.s32.totalorder %s16, 0
    %p43 = por %p41, %p42
    %s45 = sadd.s32 %s44, 1
    %p48 = scmp.eq.s32.totalorder %s10, 1
    %p49 = scmp.ne.s32.totalorder %s44, %s46
    %p50 = scmp.eq.s32.totalorder %s10, 0
    %p51 = por %p49, %p50
    %p52 = scmp.ne.s32.totalorder %s44, %s46
    %p53 = scmp.eq.s32.totalorder %s15, 1
    %p54 = por %p52, %p53
    %p55 = scmp.ne.s32.totalorder %s46, %s47
    %p56 = scmp.eq.s32.totalorder %s15, 0
    %p57 = por %p55, %p56
    %p58 = scmp.ne.s32.totalorder %s46, %s47
    %p59 = scmp.eq.s32.totalorder %s16, 1
    %p60 = por %p58, %p59
    %p62 = scmp.ne.s32.totalorder %s47, %s61
    %p63 = scmp.eq.s32.totalorder %s16, 0
    %p64 = por %p62, %p63
    %s66 = sadd.s32 %s65, 1
    %p69 = scmp.eq.s32.totalorder %s10, 1
    %p70 = scmp.ne.s32.totalorder %s65, %s67
    %p71 = scmp.eq.s32.totalorder %s10, 0
    %p72 = por %p70, %p71
    %p73 = scmp.ne.s32.totalorder %s65, %s67
    %p74 = scmp.eq.s32.totalorder %s15, 1
    %p75 = por %p73, %p74
    %p76 = scmp.ne.s32.totalorder %s67, %s68
    %p77 = scmp.eq.s32.totalorder %s15, 0
    %p78 = por %p76, %p77
    %p79 = scmp.ne.s32.totalorder %s67, %s68
    %p80 = scmp.eq.s32.totalorder %s16, 1
    %p81 = por %p79, %p80
    %p83 = scmp.ne.s32.totalorder %s68, %s82
    %p84 = scmp.eq.s32.totalorder %s16, 0
    %p85 = por %p83, %p84
    %s87 = sadd.s32 %s86, 1
    %p90 = scmp.eq.s32.totalorder %s10, 1
    %p91 = scmp.ne.s32.totalorder %s86, %s88
    %p92 = scmp.eq.s32.totalorder %s10, 0
    %p93 = por %p91, %p92
    %p94 = scmp.ne.s32.totalorder %s86, %s88
    %p95 = scmp.eq.s32.totalorder %s15, 1
    %p96 = por %p94, %p95
    %p97 = scmp.ne.s32.totalorder %s88, %s89
    %p98 = scmp.eq.s32.totalorder %s15, 0
    %p99 = por %p97, %p98
    %p100 = scmp.ne.s32.totalorder %s88, %s89
    %p101 = scmp.eq.s32.totalorder %s16, 1
    %p102 = por %p100, %p101
    %p104 = scmp.ne.s32.totalorder %s89, %s103
    %p105 = scmp.eq.s32.totalorder %s16, 0
    %p106 = por %p104, %p105
    %s107 = ssub.s32 %s10, %s17
    %p108 = scmp.eq.s32.totalorder %s107, 0
    %s110 = sadd.s32 %s109, 1
    %s111 = scalar_select %p108, %s109, %s110
    %p114 = pneg %p108
    %p115 = scmp.eq.s32.totalorder %s10, 1
    %p116 = por %p114, %p115
    %p117 = scmp.ne.s32.totalorder %s109, %s112
    %p118 = scmp.eq.s32.totalorder %s10, 0
    %p119 = por %p117, %p118
    %p120 = scmp.ne.s32.totalorder %s109, %s112
    %p121 = scmp.eq.s32.totalorder %s15, 1
    %p122 = por %p120, %p121
    %p123 = scmp.ne.s32.totalorder %s112, %s113
    %p124 = scmp.eq.s32.totalorder %s15, 0
    %p125 = por %p123, %p124
    %p126 = scmp.ne.s32.totalorder %s112, %s113
    %p127 = scmp.eq.s32.totalorder %s16, 1
    %p128 = por %p126, %p127
    %p130 = scmp.ne.s32.totalorder %s113, %s129
    %p131 = scmp.eq.s32.totalorder %s16, 0
    %p132 = por %p130, %p131
    %p133 = scmp.le.s32.totalorder 1, %s10
    %p134 = scmp.lt.s32.totalorder %s10, 3
    %p135 = pnand %p133, %p134
    %p136 = pneg %p135
    // Predicated region
    $region9: #{tpu_custom_call.1} parent=5 // pred_check
      _
    $region10: #{tpu_custom_call.1} parent=5 // pred_check_branch
      %138 = sbr.rel (%p135) target = $region12
    $region11: #{tpu_custom_call.1} parent=5 // pred_region
      %s139 = ssub.s32 %s10, 1
      // Predicated region
      $region13: #{tpu_custom_call.1} parent=11 // pred_check
        %p140 = pneg %p57
      $region14: #{tpu_custom_call.1} parent=11 // pred_check_branch
        %142 = sbr.rel (%p140) target = $region16
      $region15: #{tpu_custom_call.1} parent=11 // pred_region
        _
      $region16: #{tpu_custom_call.1} parent=11 // pred_fallthru
        _
      // Predicated region
      $region17: #{tpu_custom_call.1} parent=11 // pred_check
        %p143 = pneg %p78
      $region18: #{tpu_custom_call.1} parent=11 // pred_check_branch
        %145 = sbr.rel (%p143) target = $region20
      $region19: #{tpu_custom_call.1} parent=11 // pred_region
        _
      $region20: #{tpu_custom_call.1} parent=11 // pred_fallthru
        _
      // Predicated region
      $region21: #{tpu_custom_call.1} parent=11 // pred_check
        %p146 = pneg %p99
      $region22: #{tpu_custom_call.1} parent=11 // pred_check_branch
        %148 = sbr.rel (%p146) target = $region24
      $region23: #{tpu_custom_call.1} parent=11 // pred_region
        _
      $region24: #{tpu_custom_call.1} parent=11 // pred_fallthru
        _
    $region12: #{tpu_custom_call.1} parent=5 // pred_fallthru
      _
    %p149 = scmp.lt.s32.totalorder %s10, 2
    // Predicated region
    $region25: #{tpu_custom_call.1} parent=5 // pred_check
      %p150 = pneg %p149
    $region26: #{tpu_custom_call.1} parent=5 // pred_check_branch
      %152 = sbr.rel (%p150) target = $region28
    $region27: #{tpu_custom_call.1} parent=5 // pred_region
      // Predicated region
      $region29: #{tpu_custom_call.1} parent=27 // pred_check
        %p153 = pneg %p30
      $region30: #{tpu_custom_call.1} parent=27 // pred_check_branch
        %155 = sbr.rel (%p153) target = $region32
      $region31: #{tpu_custom_call.1} parent=27 // pred_region
        %p156 = scmp.lt.s32.totalorder %s10, 1
        %s157 = scalar_select %p156, %s10, 1
        %s158 = smul.addr %s157, 4
        %s159 = smul.addr %s158, 8
        %s160 = scalar_lea.vmem %s0, %s159
      $region32: #{tpu_custom_call.1} parent=27 // pred_fallthru
        _
    $region28: #{tpu_custom_call.1} parent=5 // pred_fallthru
      _
    %p161 = scmp.le.s32.totalorder 1, %s10
    %p162 = scmp.lt.s32.totalorder %s10, 3
    %p163 = pnand %p161, %p162
    %p164 = pneg %p163
    // Predicated region
    $region33: #{tpu_custom_call.1} parent=5 // pred_check
      _
    $region34: #{tpu_custom_call.1} parent=5 // pred_check_branch
      %166 = sbr.rel (%p163) target = $region36
    $region35: #{tpu_custom_call.1} parent=5 // pred_region
      %s167 = ssub.s32 %s10, 1
      %p168 = scmp.lt.s32.totalorder %s15, 1
      %s169 = scalar_select %p168, %s15, 1
      %s170 = smul.addr %s169, 4
      %s171 = smul.addr %s170, 8
      %s172 = scalar_lea.vmem %s0, %s171
      %p173 = pneg %p36
      %p174 = pneg %p33
      %p175 = pneg %p57
      %p176 = pneg %p54
      %p177 = pneg %p78
      %p178 = pneg %p75
      %p179 = pneg %p99
      %p180 = pneg %p96
      %p181 = pneg %p125
      %p182 = pneg %p122
      %p183 = scmp.lt.s32.totalorder %s15, 1
      %s184 = scalar_select %p183, %s15, 1
      %s185 = smul.addr %s184, 4
      %s186 = smul.addr %s185, 8
      %s187 = scalar_lea.vmem %s4, %s186
      %p188 = scmp.lt.s32.totalorder %s15, 1
      %s189 = scalar_select %p188, %s15, 1
      %s190 = smul.addr %s189, 4
      %s191 = smul.addr %s190, 8
      %s192 = scalar_lea.vmem %s0, %s191
      %p193 = scmp.lt.s32.totalorder %s15, 1
      %s194 = scalar_select %p193, %s15, 1
      %s195 = smul.addr %s194, 4
      %s196 = smul.addr %s195, 8
      %s197 = scalar_lea.vmem %s4, %s196
      %v198 = vld [vmem:[%s3] sm:$0xff]
      %v199 = vld [vmem:[%s3 + $0x8] sm:$0xff]
      %v200 = vld [vmem:[%s1] sm:$0xff]
      %v201 = vld [vmem:[%s1 + $0x8] sm:$0xff]
      %v202 = vld [vmem:[%s1 + $0x10] sm:$0xff]
      %v203 = vld [vmem:[%s1 + $0x18] sm:$0xff]
      %v204 = vld [vmem:[%s2] sm:$0xff]
      %v205 = vld [vmem:[%s2 + $0x8] sm:$0xff]
      %v206 = vld [vmem:[%s2 + $0x10] sm:$0xff]
      %v207 = vld [vmem:[%s2 + $0x18] sm:$0xff]
      %v208 = vlaneseq
      %v209 = vand.u32 %v208, 127
      %v210 = vadd.s32 %v209, 4294967295
      %vm211 = vcmp.ge.s32.totalorder %v210, 0
      %vm212 = vcmp.lt.s32.totalorder %v210, 16
      %vm213 = vmand %vm211, %vm212
      %v214 = vadd.s32 %v209, 1
      %vm215 = vcmp.ge.s32.totalorder %v214, 0
      %vm216 = vcmp.lt.s32.totalorder %v214, 16
      %vm217 = vmand %vm215, %vm216
      %v218 = vld [vmem:[%s192] sm:$0xff]
      %v219 = vld [vmem:[%s192 + $0x8] sm:$0xff]
      %v220 = vld [vmem:[%s192 + $0x10] sm:$0xff]
      %v221 = vld [vmem:[%s192 + $0x18] sm:$0xff]
      %vm222 = vcmask 1047680
      %223 = vrot.lane.b32.xlu0 %v218, 16
      %v224 = vpop.permute.xlu0 %223
      %v225 = vsel %vm222, %v224, %v218
      %226 = vrot.lane.b32.xlu0 %v219, 16
      %v227 = vpop.permute.xlu0 %226
      %v228 = vsel %vm222, %v227, %v219
      %229 = vrot.lane.b32.xlu0 %v220, 16
      %v230 = vpop.permute.xlu0 %229
      %v231 = vsel %vm222, %v230, %v220
      %232 = vrot.lane.b32.xlu0 %v221, 16
      %v233 = vpop.permute.xlu0 %232
      %v234 = vsel %vm222, %v233, %v221
      %235 = vrot.lane.b32.xlu0 %v225, 16
      %v236 = vpop.permute.xlu0 %235
      %237 = vrot.lane.b32.xlu0 %v228, 16
      %v238 = vpop.permute.xlu0 %237
      %239 = vrot.lane.b32.xlu0 %v231, 16
      %v240 = vpop.permute.xlu0 %239
      %241 = vrot.lane.b32.xlu0 %v234, 16
      %v242 = vpop.permute.xlu0 %241
      %v243 = vsel %vm222, %v236, %v218
      %v244 = vsel %vm222, %v238, %v219
      %v245 = vsel %vm222, %v240, %v220
      %v246 = vsel %vm222, %v242, %v221
      %v247 = vsel %vm213, 1, 0
      %vm248 = vcmp.eq.s32.totalorder %v247, 1
      %253 = vrot.lane.b32.xlu0 %v243, 113
      %v254 = vpop.permute.xlu0 %253
      %255 = vrot.lane.b32.xlu0 %v244, 113
      %v256 = vpop.permute.xlu0 %255
      %257 = vrot.lane.b32.xlu0 %v245, 113
      %v258 = vpop.permute.xlu0 %257
      %259 = vrot.lane.b32.xlu0 %v246, 113
      %v260 = vpop.permute.xlu0 %259
      %v265 = vsel %vm248, %v254, 0.0
      %v266 = vsel %vm248, %v256, 0.0
      %v267 = vsel %vm248, %v258, 0.0
      %v268 = vsel %vm248, %v260, 0.0
      %v269 = vsel %vm217, 1, 0
      %vm270 = vcmp.eq.s32.totalorder %v269, 1
      %271 = vrot.lane.b32.xlu0 %v243, 127
      %v272 = vpop.permute.xlu0 %271
      %273 = vrot.lane.b32.xlu0 %v244, 127
      %v274 = vpop.permute.xlu0 %273
      %275 = vrot.lane.b32.xlu0 %v245, 127
      %v276 = vpop.permute.xlu0 %275
      %277 = vrot.lane.b32.xlu0 %v246, 127
      %v278 = vpop.permute.xlu0 %277
      %v283 = vsel %vm270, %v272, 0.0
      %v284 = vsel %vm270, %v274, 0.0
      %v285 = vsel %vm270, %v276, 0.0
      %v286 = vsel %vm270, %v278, 0.0
      %288 = vset.pattern.permute.xlu0 0
      %289 = vperm.xlu0 %288, %v200
      %v290 = vpop.permute.xlu0 %289
      %293 = vset.pattern.permute.xlu0 0
      %294 = vperm.xlu0 %293, %v201
      %v295 = vpop.permute.xlu0 %294
      %298 = vset.pattern.permute.xlu0 0
      %299 = vperm.xlu0 %298, %v202
      %v300 = vpop.permute.xlu0 %299
      %303 = vset.pattern.permute.xlu0 0
      %304 = vperm.xlu0 %303, %v203
      %v305 = vpop.permute.xlu0 %304
      %v307 = vmul.f32 %v265, %v290
      %v308 = vmul.f32 %v266, %v295
      %v309 = vmul.f32 %v267, %v300
      %v310 = vmul.f32 %v268, %v305
      %311 = vset.pattern.permute.xlu0 1
      %312 = vperm.xlu0 %311, %v200
      %v313 = vpop.permute.xlu0 %312
      %315 = vset.pattern.permute.xlu0 1
      %316 = vperm.xlu0 %315, %v201
      %v317 = vpop.permute.xlu0 %316
      %319 = vset.pattern.permute.xlu0 1
      %320 = vperm.xlu0 %319, %v202
      %v321 = vpop.permute.xlu0 %320
      %323 = vset.pattern.permute.xlu0 1
      %324 = vperm.xlu0 %323, %v203
      %v325 = vpop.permute.xlu0 %324
      %v327 = vmul.f32 %v218, %v313
      %v328 = vmul.f32 %v219, %v317
      %v329 = vmul.f32 %v220, %v321
      %v330 = vmul.f32 %v221, %v325
      %v331 = vadd.f32 %v307, %v327
      %v332 = vadd.f32 %v308, %v328
      %v333 = vadd.f32 %v309, %v329
      %v334 = vadd.f32 %v310, %v330
      %335 = vset.pattern.permute.xlu0 2
      %336 = vperm.xlu0 %335, %v200
      %v337 = vpop.permute.xlu0 %336
      %339 = vset.pattern.permute.xlu0 2
      %340 = vperm.xlu0 %339, %v201
      %v341 = vpop.permute.xlu0 %340
      %343 = vset.pattern.permute.xlu0 2
      %344 = vperm.xlu0 %343, %v202
      %v345 = vpop.permute.xlu0 %344
      %347 = vset.pattern.permute.xlu0 2
      %348 = vperm.xlu0 %347, %v203
      %v349 = vpop.permute.xlu0 %348
      %v351 = vmul.f32 %v283, %v337
      %v352 = vmul.f32 %v284, %v341
      %v353 = vmul.f32 %v285, %v345
      %v354 = vmul.f32 %v286, %v349
      %v355 = vadd.f32 %v331, %v351
      %v356 = vadd.f32 %v332, %v352
      %v357 = vadd.f32 %v333, %v353
      %v358 = vadd.f32 %v334, %v354
      %360 = vset.pattern.permute.xlu0 0
      %361 = vperm.xlu0 %360, %v204
      %v362 = vpop.permute.xlu0 %361
      %365 = vset.pattern.permute.xlu0 0
      %366 = vperm.xlu0 %365, %v205
      %v367 = vpop.permute.xlu0 %366
      %370 = vset.pattern.permute.xlu0 0
      %371 = vperm.xlu0 %370, %v206
      %v372 = vpop.permute.xlu0 %371
      %375 = vset.pattern.permute.xlu0 0
      %376 = vperm.xlu0 %375, %v207
      %v377 = vpop.permute.xlu0 %376
      %vm379 = vcmask 130048
      %v381 = vsel %vm379, %v355, 0
      %v384 = vsel %vm379, %v356, 0
      %v387 = vsel %vm379, %v357, 0
      %v390 = vsel %vm379, %v358, 0
      %392 = vmatprep.subr.mxu0 0.0
      %v393 = vand.u32 %v198, 4294901760
      %394 = vmatpush1.msra.mxu0 %v393
      %395 = vmatprep.subr.mxu0 0.0
      %v396 = vand.u32 %v199, 4294901760
      %397 = vmatpush1.msra.mxu0 %v396
      %398 = vmatprep.subr.mxu0 0.0
      %399 = vmatpush1.msra.mxu0 0.0
      %400 = vmatprep.subr.mxu0 0.0
      %401 = vmatpush1.msra.mxu0 0.0
      %402 = vmatprep.subr.mxu0 0.0
      %403 = vmatpush1.msra.mxu0 0.0
      %404 = vmatprep.subr.mxu0 0.0
      %405 = vmatpush1.msra.mxu0 0.0
      %406 = vmatprep.subr.mxu0 0.0
      %407 = vmatpush1.msra.mxu0 0.0
      %408 = vmatprep.subr.mxu0 0.0
      %409 = vmatpush1.msra.mxu0 0.0
      %410 = vmatprep.subr.mxu0 0.0
      %411 = vmatpush1.msra.mxu0 0.0
      %412 = vmatprep.subr.mxu0 0.0
      %413 = vmatpush1.msra.mxu0 0.0
      %414 = vmatprep.subr.mxu0 0.0
      %415 = vmatpush1.msra.mxu0 0.0
      %416 = vmatprep.subr.mxu0 0.0
      %417 = vmatpush1.msra.mxu0 0.0
      %418 = vmatprep.subr.mxu0 0.0
      %419 = vmatpush1.msra.mxu0 0.0
      %420 = vmatprep.subr.mxu0 0.0
      %421 = vmatpush1.msra.mxu0 0.0
      %422 = vmatprep.subr.mxu0 0.0
      %423 = vmatpush1.msra.mxu0 0.0
      %424 = vmatprep.subr.mxu0 0.0
      %425 = vmatpush1.msra.mxu0 0.0
      %426 = vmatprep.subr.mxu0 0.0
      %427 = vmatpush1.msra.mxu0 0.0
      %428 = vmatprep.subr.mxu0 0.0
      %429 = vmatpush1.msra.mxu0 0.0
      %430 = vmatprep.subr.mxu0 0.0
      %431 = vmatpush1.msra.mxu0 0.0
      %432 = vmatprep.subr.mxu0 0.0
      %433 = vmatpush1.msra.mxu0 0.0
      %434 = vmatprep.subr.mxu0 0.0
      %435 = vmatpush1.msra.mxu0 0.0
      %436 = vmatprep.subr.mxu0 0.0
      %437 = vmatpush1.msra.mxu0 0.0
      %438 = vmatprep.subr.mxu0 0.0
      %439 = vmatpush1.msra.mxu0 0.0
      %440 = vmatprep.subr.mxu0 0.0
      %441 = vmatpush1.msra.mxu0 0.0
      %442 = vmatprep.subr.mxu0 0.0
      %443 = vmatpush1.msra.mxu0 0.0
      %444 = vmatprep.subr.mxu0 0.0
      %445 = vmatpush1.msra.mxu0 0.0
      %446 = vmatprep.subr.mxu0 0.0
      %447 = vmatpush1.msra.mxu0 0.0
      %448 = vmatprep.subr.mxu0 0.0
      %449 = vmatpush1.msra.mxu0 0.0
      %450 = vmatprep.subr.mxu0 0.0
      %451 = vmatpush1.msra.mxu0 0.0
      %452 = vmatprep.subr.mxu0 0.0
      %453 = vmatpush1.msra.mxu0 0.0
      %454 = vmatprep.subr.mxu0 0.0
      %455 = vmatpush1.msra.mxu0 0.0
      %456 = vmatprep.subr.mxu0 0.0
      %457 = vmatpush1.msra.mxu0 0.0
      %458 = vmatprep.mubr.f32.mxu0 0.0
      %v459 = vand.u32 %v381, 4294901760
      %v460 = vsub.f32 %v381, %v459
      %v461 = vand.u32 %v460, 4294901760
      %v462 = vsub.f32 %v460, %v461
      %v463 = vand.u32 %v462, 4294901760
      %464 = vmatmul.mubr.f32.gmra.mrb[0].mxu0 %v463
      %v465 = vpop.f32.mrb[0].mxu0
      %v466 = vadd.f32 %v362, %v465
      %v467 = vpop.f32.mrb[0].mxu0
      %468 = vmatprep.mubr.f32.mxu0 0.0
      %v469 = vand.u32 %v384, 4294901760
      %v470 = vsub.f32 %v384, %v469
      %v471 = vand.u32 %v470, 4294901760
      %v472 = vsub.f32 %v470, %v471
      %v473 = vand.u32 %v472, 4294901760
      %474 = vmatmul.mubr.f32.gmra.mrb[0].mxu0 %v473
      %v475 = vpop.f32.mrb[0].mxu0
      %v476 = vadd.f32 %v367, %v475
      %v477 = vpop.f32.mrb[0].mxu0
      %478 = vmatprep.mubr.f32.mxu0 0.0
      %v479 = vand.u32 %v387, 4294901760
      %v480 = vsub.f32 %v387, %v479
      %v481 = vand.u32 %v480, 4294901760
      %v482 = vsub.f32 %v480, %v481
      %v483 = vand.u32 %v482, 4294901760
      %484 = vmatmul.mubr.f32.gmra.mrb[0].mxu0 %v483
      %v485 = vpop.f32.mrb[0].mxu0
      %v486 = vadd.f32 %v372, %v485
      %v487 = vpop.f32.mrb[0].mxu0
      %488 = vmatprep.mubr.f32.mxu0 0.0
      %v489 = vand.u32 %v390, 4294901760
      %v490 = vsub.f32 %v390, %v489
      %v491 = vand.u32 %v490, 4294901760
      %v492 = vsub.f32 %v490, %v491
      %v493 = vand.u32 %v492, 4294901760
      %494 = vmatmul.mubr.f32.gmra.mrb[0].mxu0 %v493
      %v495 = vpop.f32.mrb[0].mxu0
      %v496 = vadd.f32 %v377, %v495
      %v497 = vpop.f32.mrb[0].mxu0
      %498 = vdwg.mxu0
      %499 = vmatprep.subr.mxu0 0.0
      %v500 = vand.u32 %v198, 4294901760
      %v501 = vsub.f32 %v198, %v500
      %v502 = vand.u32 %v501, 4294901760
      %v503 = vsub.f32 %v501, %v502
      %v504 = vand.u32 %v503, 4294901760
      %505 = vmatpush1.msra.mxu0 %v504
      %506 = vmatprep.subr.mxu0 0.0
      %v507 = vand.u32 %v199, 4294901760
      %v508 = vsub.f32 %v199, %v507
      %v509 = vand.u32 %v508, 4294901760
      %v510 = vsub.f32 %v508, %v509
      %v511 = vand.u32 %v510, 4294901760
      %512 = vmatpush1.msra.mxu0 %v511
      %513 = vmatprep.subr.mxu0 0.0
      %514 = vmatpush1.msra.mxu0 0.0
      %515 = vmatprep.subr.mxu0 0.0
      %516 = vmatpush1.msra.mxu0 0.0
      %517 = vmatprep.subr.mxu0 0.0
      %518 = vmatpush1.msra.mxu0 0.0
      %519 = vmatprep.subr.mxu0 0.0
      %520 = vmatpush1.msra.mxu0 0.0
      %521 = vmatprep.subr.mxu0 0.0
      %522 = vmatpush1.msra.mxu0 0.0
      %523 = vmatprep.subr.mxu0 0.0
      %524 = vmatpush1.msra.mxu0 0.0
      %525 = vmatprep.subr.mxu0 0.0
      %526 = vmatpush1.msra.mxu0 0.0
      %527 = vmatprep.subr.mxu0 0.0
      %528 = vmatpush1.msra.mxu0 0.0
      %529 = vmatprep.subr.mxu0 0.0
      %530 = vmatpush1.msra.mxu0 0.0
      %531 = vmatprep.subr.mxu0 0.0
      %532 = vmatpush1.msra.mxu0 0.0
      %533 = vmatprep.subr.mxu0 0.0
      %534 = vmatpush1.msra.mxu0 0.0
      %535 = vmatprep.subr.mxu0 0.0
      %536 = vmatpush1.msra.mxu0 0.0
      %537 = vmatprep.subr.mxu0 0.0
      %538 = vmatpush1.msra.mxu0 0.0
      %539 = vmatprep.subr.mxu0 0.0
      %540 = vmatpush1.msra.mxu0 0.0
      %541 = vmatprep.subr.mxu0 0.0
      %542 = vmatpush1.msra.mxu0 0.0
      %543 = vmatprep.subr.mxu0 0.0
      %544 = vmatpush1.msra.mxu0 0.0
      %545 = vmatprep.subr.mxu0 0.0
      %546 = vmatpush1.msra.mxu0 0.0
      %547 = vmatprep.subr.mxu0 0.0
      %548 = vmatpush1.msra.mxu0 0.0
      %549 = vmatprep.subr.mxu0 0.0
      %550 = vmatpush1.msra.mxu0 0.0
      %551 = vmatprep.subr.mxu0 0.0
      %552 = vmatpush1.msra.mxu0 0.0
      %553 = vmatprep.subr.mxu0 0.0
      %554 = vmatpush1.msra.mxu0 0.0
      %555 = vmatprep.subr.mxu0 0.0
      %556 = vmatpush1.msra.mxu0 0.0
      %557 = vmatprep.subr.mxu0 0.0
      %558 = vmatpush1.msra.mxu0 0.0
      %559 = vmatprep.subr.mxu0 0.0
      %560 = vmatpush1.msra.mxu0 0.0
      %561 = vmatprep.subr.mxu0 0.0
      %562 = vmatpush1.msra.mxu0 0.0
      %563 = vmatprep.subr.mxu0 0.0
      %564 = vmatpush1.msra.mxu0 0.0
      %565 = vmatprep.subr.mxu0 0.0
      %566 = vmatpush1.msra.mxu0 0.0
      %567 = vmatprep.subr.mxu0 0.0
      %568 = vmatpush1.msra.mxu0 0.0
      %569 = vmatprep.subr.mxu0 0.0
      %570 = vmatpush1.msra.mxu0 0.0
      %571 = vmatprep.subr.mxu0 0.0
      %572 = vmatpush1.msra.mxu0 0.0
      %573 = vmatprep.mubr.f32.mxu0 0.0
      %v574 = vand.u32 %v381, 4294901760
      %575 = vmatmul.mubr.f32.gmra.mrb[0].mxu0 %v574
      %v576 = vpop.f32.mrb[0].mxu0
      %v577 = vadd.f32 %v466, %v576
      %v578 = vpop.f32.mrb[0].mxu0
      %579 = vmatprep.mubr.f32.mxu0 0.0
      %v580 = vand.u32 %v384, 4294901760
      %581 = vmatmul.mubr.f32.gmra.mrb[0].mxu0 %v580
      %v582 = vpop.f32.mrb[0].mxu0
      %v583 = vadd.f32 %v476, %v582
      %v584 = vpop.f32.mrb[0].mxu0
      %585 = vmatprep.mubr.f32.mxu0 0.0
      %v586 = vand.u32 %v387, 4294901760
      %587 = vmatmul.mubr.f32.gmra.mrb[0].mxu0 %v586
      %v588 = vpop.f32.mrb[0].mxu0
      %v589 = vadd.f32 %v486, %v588
      %v590 = vpop.f32.mrb[0].mxu0
      %591 = vmatprep.mubr.f32.mxu0 0.0
      %v592 = vand.u32 %v390, 4294901760
      %593 = vmatmul.mubr.f32.gmra.mrb[0].mxu0 %v592
      %v594 = vpop.f32.mrb[0].mxu0
      %v595 = vadd.f32 %v496, %v594
      %v596 = vpop.f32.mrb[0].mxu0
      %597 = vdwg.mxu0
      %598 = vmatprep.subr.mxu0 0.0
      %v599 = vand.u32 %v198, 4294901760
      %v600 = vsub.f32 %v198, %v599
      %601 = vmatpush1.msra.mxu0 %v600
      %602 = vmatprep.subr.mxu0 0.0
      %v603 = vand.u32 %v199, 4294901760
      %v604 = vsub.f32 %v199, %v603
      %605 = vmatpush1.msra.mxu0 %v604
      %606 = vmatprep.subr.mxu0 0.0
      %607 = vmatpush1.msra.mxu0 0.0
      %608 = vmatprep.subr.mxu0 0.0
      %609 = vmatpush1.msra.mxu0 0.0
      %610 = vmatprep.subr.mxu0 0.0
      %611 = vmatpush1.msra.mxu0 0.0
      %612 = vmatprep.subr.mxu0 0.0
      %613 = vmatpush1.msra.mxu0 0.0
      %614 = vmatprep.subr.mxu0 0.0
      %615 = vmatpush1.msra.mxu0 0.0
      %616 = vmatprep.subr.mxu0 0.0
      %617 = vmatpush1.msra.mxu0 0.0
      %618 = vmatprep.subr.mxu0 0.0
      %619 = vmatpush1.msra.mxu0 0.0
      %620 = vmatprep.subr.mxu0 0.0
      %621 = vmatpush1.msra.mxu0 0.0
      %622 = vmatprep.subr.mxu0 0.0
      %623 = vmatpush1.msra.mxu0 0.0
      %624 = vmatprep.subr.mxu0 0.0
      %625 = vmatpush1.msra.mxu0 0.0
      %626 = vmatprep.subr.mxu0 0.0
      %627 = vmatpush1.msra.mxu0 0.0
      %628 = vmatprep.subr.mxu0 0.0
      %629 = vmatpush1.msra.mxu0 0.0
      %630 = vmatprep.subr.mxu0 0.0
      %631 = vmatpush1.msra.mxu0 0.0
      %632 = vmatprep.subr.mxu0 0.0
      %633 = vmatpush1.msra.mxu0 0.0
      %634 = vmatprep.subr.mxu0 0.0
      %635 = vmatpush1.msra.mxu0 0.0
      %636 = vmatprep.subr.mxu0 0.0
      %637 = vmatpush1.msra.mxu0 0.0
      %638 = vmatprep.subr.mxu0 0.0
      %639 = vmatpush1.msra.mxu0 0.0
      %640 = vmatprep.subr.mxu0 0.0
      %641 = vmatpush1.msra.mxu0 0.0
      %642 = vmatprep.subr.mxu0 0.0
      %643 = vmatpush1.msra.mxu0 0.0
      %644 = vmatprep.subr.mxu0 0.0
      %645 = vmatpush1.msra.mxu0 0.0
      %646 = vmatprep.subr.mxu0 0.0
      %647 = vmatpush1.msra.mxu0 0.0
      %648 = vmatprep.subr.mxu0 0.0
      %649 = vmatpush1.msra.mxu0 0.0
      %650 = vmatprep.subr.mxu0 0.0
      %651 = vmatpush1.msra.mxu0 0.0
      %652 = vmatprep.subr.mxu0 0.0
      %653 = vmatpush1.msra.mxu0 0.0
      %654 = vmatprep.subr.mxu0 0.0
      %655 = vmatpush1.msra.mxu0 0.0
      %656 = vmatprep.subr.mxu0 0.0
      %657 = vmatpush1.msra.mxu0 0.0
      %658 = vmatprep.subr.mxu0 0.0
      %659 = vmatpush1.msra.mxu0 0.0
      %660 = vmatprep.subr.mxu0 0.0
      %661 = vmatpush1.msra.mxu0 0.0
      %662 = vmatprep.subr.mxu0 0.0
      %663 = vmatpush1.msra.mxu0 0.0
      %664 = vmatprep.subr.mxu0 0.0
      %665 = vmatpush1.msra.mxu0 0.0
      %666 = vmatprep.mubr.f32.mxu0 0.0
      %v667 = vand.u32 %v381, 4294901760
      %v668 = vsub.f32 %v381, %v667
      %669 = vmatmul.mubr.f32.gmra.mrb[0].mxu0 %v668
      %v670 = vpop.f32.mrb[0].mxu0
      %v671 = vadd.f32 %v577, %v670
      %v672 = vpop.f32.mrb[0].mxu0
      %673 = vmatprep.mubr.f32.mxu0 0.0
      %v674 = vand.u32 %v384, 4294901760
      %v675 = vsub.f32 %v384, %v674
      %676 = vmatmul.mubr.f32.gmra.mrb[0].mxu0 %v675
      %v677 = vpop.f32.mrb[0].mxu0
      %v678 = vadd.f32 %v583, %v677
      %v679 = vpop.f32.mrb[0].mxu0
      %680 = vmatprep.mubr.f32.mxu0 0.0
      %v681 = vand.u32 %v387, 4294901760
      %v682 = vsub.f32 %v387, %v681
      %683 = vmatmul.mubr.f32.gmra.mrb[0].mxu0 %v682
      %v684 = vpop.f32.mrb[0].mxu0
      %v685 = vadd.f32 %v589, %v684
      %v686 = vpop.f32.mrb[0].mxu0
      %687 = vmatprep.mubr.f32.mxu0 0.0
      %v688 = vand.u32 %v390, 4294901760
      %v689 = vsub.f32 %v390, %v688
      %690 = vmatmul.mubr.f32.gmra.mrb[0].mxu0 %v689
      %v691 = vpop.f32.mrb[0].mxu0
      %v692 = vadd.f32 %v595, %v691
      %v693 = vpop.f32.mrb[0].mxu0
      %694 = vdwg.mxu0
      %695 = vmatprep.subr.mxu0 0.0
      %v696 = vand.u32 %v198, 4294901760
      %697 = vmatpush1.msra.mxu0 %v696
      %698 = vmatprep.subr.mxu0 0.0
      %v699 = vand.u32 %v199, 4294901760
      %700 = vmatpush1.msra.mxu0 %v699
      %701 = vmatprep.subr.mxu0 0.0
      %702 = vmatpush1.msra.mxu0 0.0
      %703 = vmatprep.subr.mxu0 0.0
      %704 = vmatpush1.msra.mxu0 0.0
      %705 = vmatprep.subr.mxu0 0.0
      %706 = vmatpush1.msra.mxu0 0.0
      %707 = vmatprep.subr.mxu0 0.0
      %708 = vmatpush1.msra.mxu0 0.0
      %709 = vmatprep.subr.mxu0 0.0
      %710 = vmatpush1.msra.mxu0 0.0
      %711 = vmatprep.subr.mxu0 0.0
      %712 = vmatpush1.msra.mxu0 0.0
      %713 = vmatprep.subr.mxu0 0.0
      %714 = vmatpush1.msra.mxu0 0.0
      %715 = vmatprep.subr.mxu0 0.0
      %716 = vmatpush1.msra.mxu0 0.0
      %717 = vmatprep.subr.mxu0 0.0
      %718 = vmatpush1.msra.mxu0 0.0
      %719 = vmatprep.subr.mxu0 0.0
      %720 = vmatpush1.msra.mxu0 0.0
      %721 = vmatprep.subr.mxu0 0.0
      %722 = vmatpush1.msra.mxu0 0.0
      %723 = vmatprep.subr.mxu0 0.0
      %724 = vmatpush1.msra.mxu0 0.0
      %725 = vmatprep.subr.mxu0 0.0
      %726 = vmatpush1.msra.mxu0 0.0
      %727 = vmatprep.subr.mxu0 0.0
      %728 = vmatpush1.msra.mxu0 0.0
      %729 = vmatprep.subr.mxu0 0.0
      %730 = vmatpush1.msra.mxu0 0.0
      %731 = vmatprep.subr.mxu0 0.0
      %732 = vmatpush1.msra.mxu0 0.0
      %733 = vmatprep.subr.mxu0 0.0
      %734 = vmatpush1.msra.mxu0 0.0
      %735 = vmatprep.subr.mxu0 0.0
      %736 = vmatpush1.msra.mxu0 0.0
      %737 = vmatprep.subr.mxu0 0.0
      %738 = vmatpush1.msra.mxu0 0.0
      %739 = vmatprep.subr.mxu0 0.0
      %740 = vmatpush1.msra.mxu0 0.0
      %741 = vmatprep.subr.mxu0 0.0
      %742 = vmatpush1.msra.mxu0 0.0
      %743 = vmatprep.subr.mxu0 0.0
      %744 = vmatpush1.msra.mxu0 0.0
      %745 = vmatprep.subr.mxu0 0.0
      %746 = vmatpush1.msra.mxu0 0.0
      %747 = vmatprep.subr.mxu0 0.0
      %748 = vmatpush1.msra.mxu0 0.0
      %749 = vmatprep.subr.mxu0 0.0
      %750 = vmatpush1.msra.mxu0 0.0
      %751 = vmatprep.subr.mxu0 0.0
      %752 = vmatpush1.msra.mxu0 0.0
      %753 = vmatprep.subr.mxu0 0.0
      %754 = vmatpush1.msra.mxu0 0.0
      %755 = vmatprep.subr.mxu0 0.0
      %756 = vmatpush1.msra.mxu0 0.0
      %757 = vmatprep.subr.mxu0 0.0
      %758 = vmatpush1.msra.mxu0 0.0
      %759 = vmatprep.subr.mxu0 0.0
      %760 = vmatpush1.msra.mxu0 0.0
      %761 = vmatprep.mubr.f32.mxu0 0.0
      %v762 = vand.u32 %v381, 4294901760
      %v763 = vsub.f32 %v381, %v762
      %v764 = vand.u32 %v763, 4294901760
      %765 = vmatmul.mubr.f32.gmra.mrb[0].mxu0 %v764
      %v766 = vpop.f32.mrb[0].mxu0
      %v767 = vadd.f32 %v671, %v766
      %v768 = vpop.f32.mrb[0].mxu0
      %769 = vmatprep.mubr.f32.mxu0 0.0
      %v770 = vand.u32 %v384, 4294901760
      %v771 = vsub.f32 %v384, %v770
      %v772 = vand.u32 %v771, 4294901760
      %773 = vmatmul.mubr.f32.gmra.mrb[0].mxu0 %v772
      %v774 = vpop.f32.mrb[0].mxu0
      %v775 = vadd.f32 %v678, %v774
      %v776 = vpop.f32.mrb[0].mxu0
      %777 = vmatprep.mubr.f32.mxu0 0.0
      %v778 = vand.u32 %v387, 4294901760
      %v779 = vsub.f32 %v387, %v778
      %v780 = vand.u32 %v779, 4294901760
      %781 = vmatmul.mubr.f32.gmra.mrb[0].mxu0 %v780
      %v782 = vpop.f32.mrb[0].mxu0
      %v783 = vadd.f32 %v685, %v782
      %v784 = vpop.f32.mrb[0].mxu0
      %785 = vmatprep.mubr.f32.mxu0 0.0
      %v786 = vand.u32 %v390, 4294901760
      %v787 = vsub.f32 %v390, %v786
      %v788 = vand.u32 %v787, 4294901760
      %789 = vmatmul.mubr.f32.gmra.mrb[0].mxu0 %v788
      %v790 = vpop.f32.mrb[0].mxu0
      %v791 = vadd.f32 %v692, %v790
      %v792 = vpop.f32.mrb[0].mxu0
      %793 = vdwg.mxu0
      %794 = vmatprep.subr.mxu0 0.0
      %v795 = vand.u32 %v198, 4294901760
      %v796 = vsub.f32 %v198, %v795
      %v797 = vand.u32 %v796, 4294901760
      %798 = vmatpush1.msra.mxu0 %v797
      %799 = vmatprep.subr.mxu0 0.0
      %v800 = vand.u32 %v199, 4294901760
      %v801 = vsub.f32 %v199, %v800
      %v802 = vand.u32 %v801, 4294901760
      %803 = vmatpush1.msra.mxu0 %v802
      %804 = vmatprep.subr.mxu0 0.0
      %805 = vmatpush1.msra.mxu0 0.0
      %806 = vmatprep.subr.mxu0 0.0
      %807 = vmatpush1.msra.mxu0 0.0
      %808 = vmatprep.subr.mxu0 0.0
      %809 = vmatpush1.msra.mxu0 0.0
      %810 = vmatprep.subr.mxu0 0.0
      %811 = vmatpush1.msra.mxu0 0.0
      %812 = vmatprep.subr.mxu0 0.0
      %813 = vmatpush1.msra.mxu0 0.0
      %814 = vmatprep.subr.mxu0 0.0
      %815 = vmatpush1.msra.mxu0 0.0
      %816 = vmatprep.subr.mxu0 0.0
      %817 = vmatpush1.msra.mxu0 0.0
      %818 = vmatprep.subr.mxu0 0.0
      %819 = vmatpush1.msra.mxu0 0.0
      %820 = vmatprep.subr.mxu0 0.0
      %821 = vmatpush1.msra.mxu0 0.0
      %822 = vmatprep.subr.mxu0 0.0
      %823 = vmatpush1.msra.mxu0 0.0
      %824 = vmatprep.subr.mxu0 0.0
      %825 = vmatpush1.msra.mxu0 0.0
      %826 = vmatprep.subr.mxu0 0.0
      %827 = vmatpush1.msra.mxu0 0.0
      %828 = vmatprep.subr.mxu0 0.0
      %829 = vmatpush1.msra.mxu0 0.0
      %830 = vmatprep.subr.mxu0 0.0
      %831 = vmatpush1.msra.mxu0 0.0
      %832 = vmatprep.subr.mxu0 0.0
      %833 = vmatpush1.msra.mxu0 0.0
      %834 = vmatprep.subr.mxu0 0.0
      %835 = vmatpush1.msra.mxu0 0.0
      %836 = vmatprep.subr.mxu0 0.0
      %837 = vmatpush1.msra.mxu0 0.0
      %838 = vmatprep.subr.mxu0 0.0
      %839 = vmatpush1.msra.mxu0 0.0
      %840 = vmatprep.subr.mxu0 0.0
      %841 = vmatpush1.msra.mxu0 0.0
      %842 = vmatprep.subr.mxu0 0.0
      %843 = vmatpush1.msra.mxu0 0.0
      %844 = vmatprep.subr.mxu0 0.0
      %845 = vmatpush1.msra.mxu0 0.0
      %846 = vmatprep.subr.mxu0 0.0
      %847 = vmatpush1.msra.mxu0 0.0
      %848 = vmatprep.subr.mxu0 0.0
      %849 = vmatpush1.msra.mxu0 0.0
      %850 = vmatprep.subr.mxu0 0.0
      %851 = vmatpush1.msra.mxu0 0.0
      %852 = vmatprep.subr.mxu0 0.0
      %853 = vmatpush1.msra.mxu0 0.0
      %854 = vmatprep.subr.mxu0 0.0
      %855 = vmatpush1.msra.mxu0 0.0
      %856 = vmatprep.subr.mxu0 0.0
      %857 = vmatpush1.msra.mxu0 0.0
      %858 = vmatprep.subr.mxu0 0.0
      %859 = vmatpush1.msra.mxu0 0.0
      %860 = vmatprep.subr.mxu0 0.0
      %861 = vmatpush1.msra.mxu0 0.0
      %862 = vmatprep.subr.mxu0 0.0
      %863 = vmatpush1.msra.mxu0 0.0
      %864 = vmatprep.mubr.f32.mxu0 0.0
      %v865 = vand.u32 %v381, 4294901760
      %866 = vmatmul.mubr.f32.gmra.mrb[0].mxu0 %v865
      %v867 = vpop.f32.mrb[0].mxu0
      %v868 = vadd.f32 %v767, %v867
      %v869 = vpop.f32.mrb[0].mxu0
      %870 = vmatprep.mubr.f32.mxu0 0.0
      %v871 = vand.u32 %v384, 4294901760
      %872 = vmatmul.mubr.f32.gmra.mrb[0].mxu0 %v871
      %v873 = vpop.f32.mrb[0].mxu0
      %v874 = vadd.f32 %v775, %v873
      %v875 = vpop.f32.mrb[0].mxu0
      %876 = vmatprep.mubr.f32.mxu0 0.0
      %v877 = vand.u32 %v387, 4294901760
      %878 = vmatmul.mubr.f32.gmra.mrb[0].mxu0 %v877
      %v879 = vpop.f32.mrb[0].mxu0
      %v880 = vadd.f32 %v783, %v879
      %v881 = vpop.f32.mrb[0].mxu0
      %882 = vmatprep.mubr.f32.mxu0 0.0
      %v883 = vand.u32 %v390, 4294901760
      %884 = vmatmul.mubr.f32.gmra.mrb[0].mxu0 %v883
      %v885 = vpop.f32.mrb[0].mxu0
      %v886 = vadd.f32 %v791, %v885
      %v887 = vpop.f32.mrb[0].mxu0
      %888 = vdwg.mxu0
      %889 = vmatprep.subr.mxu0 0.0
      %v890 = vand.u32 %v198, 4294901760
      %891 = vmatpush1.msra.mxu0 %v890
      %892 = vmatprep.subr.mxu0 0.0
      %v893 = vand.u32 %v199, 4294901760
      %894 = vmatpush1.msra.mxu0 %v893
      %895 = vmatprep.subr.mxu0 0.0
      %896 = vmatpush1.msra.mxu0 0.0
      %897 = vmatprep.subr.mxu0 0.0
      %898 = vmatpush1.msra.mxu0 0.0
      %899 = vmatprep.subr.mxu0 0.0
      %900 = vmatpush1.msra.mxu0 0.0
      %901 = vmatprep.subr.mxu0 0.0
      %902 = vmatpush1.msra.mxu0 0.0
      %903 = vmatprep.subr.mxu0 0.0
      %904 = vmatpush1.msra.mxu0 0.0
      %905 = vmatprep.subr.mxu0 0.0
      %906 = vmatpush1.msra.mxu0 0.0
      %907 = vmatprep.subr.mxu0 0.0
      %908 = vmatpush1.msra.mxu0 0.0
      %909 = vmatprep.subr.mxu0 0.0
      %910 = vmatpush1.msra.mxu0 0.0
      %911 = vmatprep.subr.mxu0 0.0
      %912 = vmatpush1.msra.mxu0 0.0
      %913 = vmatprep.subr.mxu0 0.0
      %914 = vmatpush1.msra.mxu0 0.0
      %915 = vmatprep.subr.mxu0 0.0
      %916 = vmatpush1.msra.mxu0 0.0
      %917 = vmatprep.subr.mxu0 0.0
      %918 = vmatpush1.msra.mxu0 0.0
      %919 = vmatprep.subr.mxu0 0.0
      %920 = vmatpush1.msra.mxu0 0.0
      %921 = vmatprep.subr.mxu0 0.0
      %922 = vmatpush1.msra.mxu0 0.0
      %923 = vmatprep.subr.mxu0 0.0
      %924 = vmatpush1.msra.mxu0 0.0
      %925 = vmatprep.subr.mxu0 0.0
      %926 = vmatpush1.msra.mxu0 0.0
      %927 = vmatprep.subr.mxu0 0.0
      %928 = vmatpush1.msra.mxu0 0.0
      %929 = vmatprep.subr.mxu0 0.0
      %930 = vmatpush1.msra.mxu0 0.0
      %931 = vmatprep.subr.mxu0 0.0
      %932 = vmatpush1.msra.mxu0 0.0
      %933 = vmatprep.subr.mxu0 0.0
      %934 = vmatpush1.msra.mxu0 0.0
      %935 = vmatprep.subr.mxu0 0.0
      %936 = vmatpush1.msra.mxu0 0.0
      %937 = vmatprep.subr.mxu0 0.0
      %938 = vmatpush1.msra.mxu0 0.0
      %939 = vmatprep.subr.mxu0 0.0
      %940 = vmatpush1.msra.mxu0 0.0
      %941 = vmatprep.subr.mxu0 0.0
      %942 = vmatpush1.msra.mxu0 0.0
      %943 = vmatprep.subr.mxu0 0.0
      %944 = vmatpush1.msra.mxu0 0.0
      %945 = vmatprep.subr.mxu0 0.0
      %946 = vmatpush1.msra.mxu0 0.0
      %947 = vmatprep.subr.mxu0 0.0
      %948 = vmatpush1.msra.mxu0 0.0
      %949 = vmatprep.subr.mxu0 0.0
      %950 = vmatpush1.msra.mxu0 0.0
      %951 = vmatprep.subr.mxu0 0.0
      %952 = vmatpush1.msra.mxu0 0.0
      %953 = vmatprep.subr.mxu0 0.0
      %954 = vmatpush1.msra.mxu0 0.0
      %955 = vmatprep.mubr.f32.mxu0 0.0
      %v956 = vand.u32 %v381, 4294901760
      %957 = vmatmul.mubr.f32.gmra.mrb[0].mxu0 %v956
      %v958 = vpop.f32.mrb[0].mxu0
      %v959 = vadd.f32 %v868, %v958
      %v960 = vpop.f32.mrb[0].mxu0
      %961 = vmatprep.mubr.f32.mxu0 0.0
      %v962 = vand.u32 %v384, 4294901760
      %963 = vmatmul.mubr.f32.gmra.mrb[0].mxu0 %v962
      %v964 = vpop.f32.mrb[0].mxu0
      %v965 = vadd.f32 %v874, %v964
      %v966 = vpop.f32.mrb[0].mxu0
      %967 = vmatprep.mubr.f32.mxu0 0.0
      %v968 = vand.u32 %v387, 4294901760
      %969 = vmatmul.mubr.f32.gmra.mrb[0].mxu0 %v968
      %v970 = vpop.f32.mrb[0].mxu0
      %v971 = vadd.f32 %v880, %v970
      %v972 = vpop.f32.mrb[0].mxu0
      %973 = vmatprep.mubr.f32.mxu0 0.0
      %v974 = vand.u32 %v390, 4294901760
      %975 = vmatmul.mubr.f32.gmra.mrb[0].mxu0 %v974
      %v976 = vpop.f32.mrb[0].mxu0
      %v977 = vadd.f32 %v886, %v976
      %v978 = vpop.f32.mrb[0].mxu0
      %979 = vdwg.mxu0
      %vm980 = vcmask 64512
      %981 = vst.msk [vmem:[%s197] sm:$0xff] %vm980, %v959
      %982 = vst.msk [vmem:[%s197 + $0x8] sm:$0xff] %vm980, %v965
      %983 = vst.msk [vmem:[%s197 + $0x10] sm:$0xff] %vm980, %v971
      %984 = vst.msk [vmem:[%s197 + $0x18] sm:$0xff] %vm980, %v977
      %p985 = scmp.lt.s32.totalorder %s15, 1
      %s986 = scalar_select %p985, %s15, 1
      %s987 = smul.addr %s986, 4
      %s988 = smul.addr %s987, 8
      %s989 = scalar_lea.vmem %s4, %s988
      // Predicated region
      $region37: #{tpu_custom_call.1} parent=35 // pred_check
        %p990 = pneg %p122
      $region38: #{tpu_custom_call.1} parent=35 // pred_check_branch
        %992 = sbr.rel (%p990) target = $region40
      $region39: #{tpu_custom_call.1} parent=35 // pred_region
        _
      $region40: #{tpu_custom_call.1} parent=35 // pred_fallthru
        _
    $region36: #{tpu_custom_call.1} parent=5 // pred_fallthru
      _
    %p993 = scmp.le.s32.totalorder 2, %s10
    // Predicated region
    $region41: #{tpu_custom_call.1} parent=5 // pred_check
      %p994 = pneg %p993
    $region42: #{tpu_custom_call.1} parent=5 // pred_check_branch
      %996 = sbr.rel (%p994) target = $region44
    $region43: #{tpu_custom_call.1} parent=5 // pred_region
      %s997 = ssub.s32 %s10, 2
      // Predicated region
      $region45: #{tpu_custom_call.1} parent=43 // pred_check
        %p998 = pneg %p128
      $region46: #{tpu_custom_call.1} parent=43 // pred_check_branch
        %1000 = sbr.rel (%p998) target = $region48
      $region47: #{tpu_custom_call.1} parent=43 // pred_region
        %p1001 = scmp.lt.s32.totalorder %s16, 1
        %s1002 = scalar_select %p1001, %s16, 1
        %s1003 = smul.addr %s1002, 4
        %s1004 = smul.addr %s1003, 8
        %s1005 = scalar_lea.vmem %s4, %s1004
      $region48: #{tpu_custom_call.1} parent=43 // pred_fallthru
        _
    $region44: #{tpu_custom_call.1} parent=5 // pred_fallthru
      _
  $region6: #{tpu_custom_call.1} parent=0 // loop_footer
    %s14 = sadd.s32 1, %s10
  $region7: #{tpu_custom_call.1} parent=0 // loop_footer_branch
    %9 = sbr.rel target = $region3
  $region8: #{tpu_custom_call.1} parent=0 // loop_exit
    _

// kernel: tpu_custom_call.1
$region0: #{tpu_custom_call.1}
  #allocation0 [shape = 'u32[]', space=smem, size = 0x4, offset = 0x4, fixed_abs, tag = 'smem constant byte address 0x4 - core index']
  #allocation1 [shape = 'u32[144,128]{1,0:T(1,128)}', space=vmem, size = 0x12000, scoped, tag = 'internal scratch']
  %s0 = inlined_call_operand.vmem [shape: f32[2,32,16], index: 0, kind: input, shape index: {}]
  %s1 = inlined_call_operand.vmem [shape: f32[32,3], index: 1, kind: input, shape index: {}]
  %s2 = inlined_call_operand.vmem [shape: f32[32,1], index: 2, kind: input, shape index: {}]
  %s3 = inlined_call_operand.vmem [shape: f32[16,8], index: 3, kind: input, shape index: {}]
  %s4 = inlined_call_operand.vmem [shape: f32[2,32,8], index: 4, kind: output, shape index: {}]
  %s5 = sld [smem:[#allocation0]]
  $region49: #{tpu_custom_call.1} parent=0
    _
  %s7 = ssub.s32 1, %s5
  %s8 = scalar_select 0, %s7, %s5
  loop: start=0, step=1, limit=4
  $region2: #{tpu_custom_call.1} parent=0 // loop_pre_header
    _
  $region3: #{tpu_custom_call.1} parent=0 // loop_header
    %s10 = sphi 0, %s14
    %p11 = scmp.ge.s32.totalorder %s10, 4
    %s20 = sphi 0, %s22
    %s23 = sphi 0, %s20
    %s24 = sphi 0, %s23
    %s40 = sphi 0, %s24
    %s44 = sphi 0, %s44
    %s46 = sphi 0, %s44
    %s47 = sphi 0, %s46
    %s61 = sphi 0, %s47
    %s65 = sphi 0, %s65
    %s67 = sphi 0, %s65
    %s68 = sphi 0, %s67
    %s82 = sphi 0, %s68
    %s86 = sphi 0, %s86
    %s88 = sphi 0, %s86
    %s89 = sphi 0, %s88
    %s103 = sphi 0, %s89
    %s109 = sphi 0, %s111
    %s112 = sphi 0, %s109
    %s113 = sphi 0, %s112
    %s129 = sphi 0, %s113
  $region4: #{tpu_custom_call.1} parent=0 // loop_header_branch
    %13 = sbr.rel (%p11) target = $region8
  $region5: #{tpu_custom_call.1} parent=0 // loop_body
    %s15 = ssub.s32 %s10, 1
    %s16 = ssub.s32 %s10, 2
    %s17 = sadd.s32 %s10, 1
    %s18 = ssub.s32 %s10, %s17
    %p19 = scmp.eq.s32.totalorder %s18, 0
    %s21 = sadd.s32 %s20, 1
    %s22 = scalar_select %p19, %s20, %s21
    %p25 = pneg %p19
    %p26 = scmp.eq.s32.totalorder %s10, 1
    %p27 = por %p25, %p26
    %p28 = scmp.ne.s32.totalorder %s20, %s23
    %p29 = scmp.eq.s32.totalorder %s10, 0
    %p30 = por %p28, %p29
    %p31 = scmp.ne.s32.totalorder %s20, %s23
    %p32 = scmp.eq.s32.totalorder %s15, 1
    %p33 = por %p31, %p32
    %p34 = scmp.ne.s32.totalorder %s23, %s24
    %p35 = scmp.eq.s32.totalorder %s15, 0
    %p36 = por %p34, %p35
    %p37 = scmp.ne.s32.totalorder %s23, %s24
    %p38 = scmp.eq.s32.totalorder %s16, 1
    %p39 = por %p37, %p38
    %p41 = scmp.ne.s32.totalorder %s24, %s40
    %p42 = scmp.eq.s32.totalorder %s16, 0
    %p43 = por %p41, %p42
    %s45 = sadd.s32 %s44, 1
    %p48 = scmp.eq.s32.totalorder %s10, 1
    %p49 = scmp.ne.s32.totalorder %s44, %s46
    %p50 = scmp.eq.s32.totalorder %s10, 0
    %p51 = por %p49, %p50
    %p52 = scmp.ne.s32.totalorder %s44, %s46
    %p53 = scmp.eq.s32.totalorder %s15, 1
    %p54 = por %p52, %p53
    %p55 = scmp.ne.s32.totalorder %s46, %s47
    %p56 = scmp.eq.s32.totalorder %s15, 0
    %p57 = por %p55, %p56
    %p58 = scmp.ne.s32.totalorder %s46, %s47
    %p59 = scmp.eq.s32.totalorder %s16, 1
    %p60 = por %p58, %p59
    %p62 = scmp.ne.s32.totalorder %s47, %s61
    %p63 = scmp.eq.s32.totalorder %s16, 0
    %p64 = por %p62, %p63
    %s66 = sadd.s32 %s65, 1
    %p69 = scmp.eq.s32.totalorder %s10, 1
    %p70 = scmp.ne.s32.totalorder %s65, %s67
    %p71 = scmp.eq.s32.totalorder %s10, 0
    %p72 = por %p70, %p71
    %p73 = scmp.ne.s32.totalorder %s65, %s67
    %p74 = scmp.eq.s32.totalorder %s15, 1
    %p75 = por %p73, %p74
    %p76 = scmp.ne.s32.totalorder %s67, %s68
    %p77 = scmp.eq.s32.totalorder %s15, 0
    %p78 = por %p76, %p77
    %p79 = scmp.ne.s32.totalorder %s67, %s68
    %p80 = scmp.eq.s32.totalorder %s16, 1
    %p81 = por %p79, %p80
    %p83 = scmp.ne.s32.totalorder %s68, %s82
    %p84 = scmp.eq.s32.totalorder %s16, 0
    %p85 = por %p83, %p84
    %s87 = sadd.s32 %s86, 1
    %p90 = scmp.eq.s32.totalorder %s10, 1
    %p91 = scmp.ne.s32.totalorder %s86, %s88
    %p92 = scmp.eq.s32.totalorder %s10, 0
    %p93 = por %p91, %p92
    %p94 = scmp.ne.s32.totalorder %s86, %s88
    %p95 = scmp.eq.s32.totalorder %s15, 1
    %p96 = por %p94, %p95
    %p97 = scmp.ne.s32.totalorder %s88, %s89
    %p98 = scmp.eq.s32.totalorder %s15, 0
    %p99 = por %p97, %p98
    %p100 = scmp.ne.s32.totalorder %s88, %s89
    %p101 = scmp.eq.s32.totalorder %s16, 1
    %p102 = por %p100, %p101
    %p104 = scmp.ne.s32.totalorder %s89, %s103
    %p105 = scmp.eq.s32.totalorder %s16, 0
    %p106 = por %p104, %p105
    %s107 = ssub.s32 %s10, %s17
    %p108 = scmp.eq.s32.totalorder %s107, 0
    %s110 = sadd.s32 %s109, 1
    %s111 = scalar_select %p108, %s109, %s110
    %p114 = pneg %p108
    %p115 = scmp.eq.s32.totalorder %s10, 1
    %p116 = por %p114, %p115
    %p117 = scmp.ne.s32.totalorder %s109, %s112
    %p118 = scmp.eq.s32.totalorder %s10, 0
    %p119 = por %p117, %p118
    %p120 = scmp.ne.s32.totalorder %s109, %s112
    %p121 = scmp.eq.s32.totalorder %s15, 1
    %p122 = por %p120, %p121
    %p123 = scmp.ne.s32.totalorder %s112, %s113
    %p124 = scmp.eq.s32.totalorder %s15, 0
    %p125 = por %p123, %p124
    %p126 = scmp.ne.s32.totalorder %s112, %s113
    %p127 = scmp.eq.s32.totalorder %s16, 1
    %p128 = por %p126, %p127
    %p130 = scmp.ne.s32.totalorder %s113, %s129
    %p131 = scmp.eq.s32.totalorder %s16, 0
    %p132 = por %p130, %p131
    %p133 = scmp.le.s32.totalorder 1, %s10
    %p134 = scmp.lt.s32.totalorder %s10, 3
    %p135 = pnand %p133, %p134
    %p136 = pneg %p135
    // Predicated region
    $region9: #{tpu_custom_call.1} parent=5 // pred_check
      _
    $region10: #{tpu_custom_call.1} parent=5 // pred_check_branch
      %138 = sbr.rel (%p135) target = $region12
    $region11: #{tpu_custom_call.1} parent=5 // pred_region
      %s139 = ssub.s32 %s10, 1
      // Predicated region
      $region13: #{tpu_custom_call.1} parent=11 // pred_check
        %p140 = pneg %p57
      $region14: #{tpu_custom_call.1} parent=11 // pred_check_branch
        %142 = sbr.rel (%p140) target = $region16
      $region15: #{tpu_custom_call.1} parent=11 // pred_region
        _
      $region16: #{tpu_custom_call.1} parent=11 // pred_fallthru
        _
      // Predicated region
      $region17: #{tpu_custom_call.1} parent=11 // pred_check
        %p143 = pneg %p78
      $region18: #{tpu_custom_call.1} parent=11 // pred_check_branch
        %145 = sbr.rel (%p143) target = $region20
      $region19: #{tpu_custom_call.1} parent=11 // pred_region
        _
      $region20: #{tpu_custom_call.1} parent=11 // pred_fallthru
        _
      // Predicated region
      $region21: #{tpu_custom_call.1} parent=11 // pred_check
        %p146 = pneg %p99
      $region22: #{tpu_custom_call.1} parent=11 // pred_check_branch
        %148 = sbr.rel (%p146) target = $region24
      $region23: #{tpu_custom_call.1} parent=11 // pred_region
        _
      $region24: #{tpu_custom_call.1} parent=11 // pred_fallthru
        _
    $region12: #{tpu_custom_call.1} parent=5 // pred_fallthru
      _
    %p149 = scmp.lt.s32.totalorder %s10, 2
    // Predicated region
    $region25: #{tpu_custom_call.1} parent=5 // pred_check
      %p150 = pneg %p149
    $region26: #{tpu_custom_call.1} parent=5 // pred_check_branch
      %152 = sbr.rel (%p150) target = $region28
    $region27: #{tpu_custom_call.1} parent=5 // pred_region
      // Predicated region
      $region29: #{tpu_custom_call.1} parent=27 // pred_check
        %p153 = pneg %p30
      $region30: #{tpu_custom_call.1} parent=27 // pred_check_branch
        %155 = sbr.rel (%p153) target = $region32
      $region31: #{tpu_custom_call.1} parent=27 // pred_region
        %p156 = scmp.lt.s32.totalorder %s10, 1
        %s157 = scalar_select %p156, %s10, 1
        %s158 = smul.addr %s157, 4
        %s159 = smul.addr %s158, 8
        %s160 = scalar_lea.vmem %s0, %s159
      $region32: #{tpu_custom_call.1} parent=27 // pred_fallthru
        _
    $region28: #{tpu_custom_call.1} parent=5 // pred_fallthru
      _
    %p161 = scmp.le.s32.totalorder 1, %s10
    %p162 = scmp.lt.s32.totalorder %s10, 3
    %p163 = pnand %p161, %p162
    %p164 = pneg %p163
    // Predicated region
    $region33: #{tpu_custom_call.1} parent=5 // pred_check
      _
    $region34: #{tpu_custom_call.1} parent=5 // pred_check_branch
      %166 = sbr.rel (%p163) target = $region36
    $region35: #{tpu_custom_call.1} parent=5 // pred_region
      %s167 = ssub.s32 %s10, 1
      %p168 = scmp.lt.s32.totalorder %s15, 1
      %s169 = scalar_select %p168, %s15, 1
      %s170 = smul.addr %s169, 4
      %s171 = smul.addr %s170, 8
      %s172 = scalar_lea.vmem %s0, %s171
      %p173 = pneg %p36
      %p174 = pneg %p33
      %p175 = pneg %p57
      %p176 = pneg %p54
      %p177 = pneg %p78
      %p178 = pneg %p75
      %p179 = pneg %p99
      %p180 = pneg %p96
      %p181 = pneg %p125
      %p182 = pneg %p122
      %p183 = scmp.lt.s32.totalorder %s15, 1
      %s184 = scalar_select %p183, %s15, 1
      %s185 = smul.addr %s184, 4
      %s186 = smul.addr %s185, 8
      %s187 = scalar_lea.vmem %s4, %s186
      %p188 = scmp.lt.s32.totalorder %s15, 1
      %s189 = scalar_select %p188, %s15, 1
      %s190 = smul.addr %s189, 4
      %s191 = smul.addr %s190, 8
      %s192 = scalar_lea.vmem %s0, %s191
      %p193 = scmp.lt.s32.totalorder %s15, 1
      %s194 = scalar_select %p193, %s15, 1
      %s195 = smul.addr %s194, 4
      %s196 = smul.addr %s195, 8
      %s197 = scalar_lea.vmem %s4, %s196
      %v198 = vld [vmem:[%s3] sm:$0xff]
      %v199 = vld [vmem:[%s3 + $0x8] sm:$0xff]
      %v200 = vld [vmem:[%s1] sm:$0xff]
      %v201 = vld [vmem:[%s1 + $0x8] sm:$0xff]
      %v202 = vld [vmem:[%s1 + $0x10] sm:$0xff]
      %v203 = vld [vmem:[%s1 + $0x18] sm:$0xff]
      %v204 = vld [vmem:[%s2] sm:$0xff]
      %v205 = vld [vmem:[%s2 + $0x8] sm:$0xff]
      %v206 = vld [vmem:[%s2 + $0x10] sm:$0xff]
      %v207 = vld [vmem:[%s2 + $0x18] sm:$0xff]
      %v208 = vlaneseq
      %v209 = vand.u32 %v208, 127
      %v210 = vadd.s32 %v209, 4294967295
      %vm211 = vcmp.ge.s32.totalorder %v210, 0
      %vm212 = vcmp.lt.s32.totalorder %v210, 16
      %vm213 = vmand %vm211, %vm212
      %v214 = vadd.s32 %v209, 1
      %vm215 = vcmp.ge.s32.totalorder %v214, 0
      %vm216 = vcmp.lt.s32.totalorder %v214, 16
      %vm217 = vmand %vm215, %vm216
      %v218 = vld [vmem:[%s192] sm:$0xff]
      %v219 = vld [vmem:[%s192 + $0x8] sm:$0xff]
      %v220 = vld [vmem:[%s192 + $0x10] sm:$0xff]
      %v221 = vld [vmem:[%s192 + $0x18] sm:$0xff]
      %vm222 = vcmask 1047680
      %223 = vrot.lane.b32.xlu0 %v218, 16
      %v224 = vpop.permute.xlu0 %223
      %v225 = vsel %vm222, %v224, %v218
      %226 = vrot.lane.b32.xlu0 %v219, 16
      %v227 = vpop.permute.xlu0 %226
      %v228 = vsel %vm222, %v227, %v219
      %229 = vrot.lane.b32.xlu0 %v220, 16
      %v230 = vpop.permute.xlu0 %229
      %v231 = vsel %vm222, %v230, %v220
      %232 = vrot.lane.b32.xlu0 %v221, 16
      %v233 = vpop.permute.xlu0 %232
      %v234 = vsel %vm222, %v233, %v221
      %235 = vrot.lane.b32.xlu0 %v225, 16
      %v236 = vpop.permute.xlu0 %235
      %237 = vrot.lane.b32.xlu0 %v228, 16
      %v238 = vpop.permute.xlu0 %237
      %239 = vrot.lane.b32.xlu0 %v231, 16
      %v240 = vpop.permute.xlu0 %239
      %241 = vrot.lane.b32.xlu0 %v234, 16
      %v242 = vpop.permute.xlu0 %241
      %v243 = vsel %vm222, %v236, %v218
      %v244 = vsel %vm222, %v238, %v219
      %v245 = vsel %vm222, %v240, %v220
      %v246 = vsel %vm222, %v242, %v221
      %v247 = vsel %vm213, 1, 0
      %vm248 = vcmp.eq.s32.totalorder %v247, 1
      %253 = vrot.lane.b32.xlu0 %v243, 113
      %v254 = vpop.permute.xlu0 %253
      %255 = vrot.lane.b32.xlu0 %v244, 113
      %v256 = vpop.permute.xlu0 %255
      %257 = vrot.lane.b32.xlu0 %v245, 113
      %v258 = vpop.permute.xlu0 %257
      %259 = vrot.lane.b32.xlu0 %v246, 113
      %v260 = vpop.permute.xlu0 %259
      %v265 = vsel %vm248, %v254, 0.0
      %v266 = vsel %vm248, %v256, 0.0
      %v267 = vsel %vm248, %v258, 0.0
      %v268 = vsel %vm248, %v260, 0.0
      %v269 = vsel %vm217, 1, 0
      %vm270 = vcmp.eq.s32.totalorder %v269, 1
      %271 = vrot.lane.b32.xlu0 %v243, 127
      %v272 = vpop.permute.xlu0 %271
      %273 = vrot.lane.b32.xlu0 %v244, 127
      %v274 = vpop.permute.xlu0 %273
      %275 = vrot.lane.b32.xlu0 %v245, 127
      %v276 = vpop.permute.xlu0 %275
      %277 = vrot.lane.b32.xlu0 %v246, 127
      %v278 = vpop.permute.xlu0 %277
      %v283 = vsel %vm270, %v272, 0.0
      %v284 = vsel %vm270, %v274, 0.0
      %v285 = vsel %vm270, %v276, 0.0
      %v286 = vsel %vm270, %v278, 0.0
      %288 = vset.pattern.permute.xlu0 0
      %289 = vperm.xlu0 %288, %v200
      %v290 = vpop.permute.xlu0 %289
      %293 = vset.pattern.permute.xlu0 0
      %294 = vperm.xlu0 %293, %v201
      %v295 = vpop.permute.xlu0 %294
      %298 = vset.pattern.permute.xlu0 0
      %299 = vperm.xlu0 %298, %v202
      %v300 = vpop.permute.xlu0 %299
      %303 = vset.pattern.permute.xlu0 0
      %304 = vperm.xlu0 %303, %v203
      %v305 = vpop.permute.xlu0 %304
      %v307 = vmul.f32 %v265, %v290
      %v308 = vmul.f32 %v266, %v295
      %v309 = vmul.f32 %v267, %v300
      %v310 = vmul.f32 %v268, %v305
      %311 = vset.pattern.permute.xlu0 1
      %312 = vperm.xlu0 %311, %v200
      %v313 = vpop.permute.xlu0 %312
      %315 = vset.pattern.permute.xlu0 1
      %316 = vperm.xlu0 %315, %v201
      %v317 = vpop.permute.xlu0 %316
      %319 = vset.pattern.permute.xlu0 1
      %320 = vperm.xlu0 %319, %v202
      %v321 = vpop.permute.xlu0 %320
      %323 = vset.pattern.permute.xlu0 1
      %324 = vperm.xlu0 %323, %v203
      %v325 = vpop.permute.xlu0 %324
      %v327 = vmul.f32 %v218, %v313
      %v328 = vmul.f32 %v219, %v317
      %v329 = vmul.f32 %v220, %v321
      %v330 = vmul.f32 %v221, %v325
      %v331 = vadd.f32 %v307, %v327
      %v332 = vadd.f32 %v308, %v328
      %v333 = vadd.f32 %v309, %v329
      %v334 = vadd.f32 %v310, %v330
      %335 = vset.pattern.permute.xlu0 2
      %336 = vperm.xlu0 %335, %v200
      %v337 = vpop.permute.xlu0 %336
      %339 = vset.pattern.permute.xlu0 2
      %340 = vperm.xlu0 %339, %v201
      %v341 = vpop.permute.xlu0 %340
      %343 = vset.pattern.permute.xlu0 2
      %344 = vperm.xlu0 %343, %v202
      %v345 = vpop.permute.xlu0 %344
      %347 = vset.pattern.permute.xlu0 2
      %348 = vperm.xlu0 %347, %v203
      %v349 = vpop.permute.xlu0 %348
      %v351 = vmul.f32 %v283, %v337
      %v352 = vmul.f32 %v284, %v341
      %v353 = vmul.f32 %v285, %v345
      %v354 = vmul.f32 %v286, %v349
      %v355 = vadd.f32 %v331, %v351
      %v356 = vadd.f32 %v332, %v352
      %v357 = vadd.f32 %v333, %v353
      %v358 = vadd.f32 %v334, %v354
      %360 = vset.pattern.permute.xlu0 0
      %361 = vperm.xlu0 %360, %v204
      %v362 = vpop.permute.xlu0 %361
      %365 = vset.pattern.permute.xlu0 0
      %366 = vperm.xlu0 %365, %v205
      %v367 = vpop.permute.xlu0 %366
      %370 = vset.pattern.permute.xlu0 0
      %371 = vperm.xlu0 %370, %v206
      %v372 = vpop.permute.xlu0 %371
      %375 = vset.pattern.permute.xlu0 0
      %376 = vperm.xlu0 %375, %v207
      %v377 = vpop.permute.xlu0 %376
      %vm379 = vcmask 130048
      %v381 = vsel %vm379, %v355, 0
      %v384 = vsel %vm379, %v356, 0
      %v387 = vsel %vm379, %v357, 0
      %v390 = vsel %vm379, %v358, 0
      %392 = vmatprep.subr.mxu0 0.0
      %393 = vmatpush1.msra.mxu0 %v198
      %394 = vmatprep.subr.mxu0 0.0
      %395 = vmatpush1.msra.mxu0 %v199
      %396 = vmatprep.subr.mxu0 0.0
      %397 = vmatpush1.msra.mxu0 0.0
      %398 = vmatprep.subr.mxu0 0.0
      %399 = vmatpush1.msra.mxu0 0.0
      %400 = vmatprep.subr.mxu0 0.0
      %401 = vmatpush1.msra.mxu0 0.0
      %402 = vmatprep.subr.mxu0 0.0
      %403 = vmatpush1.msra.mxu0 0.0
      %404 = vmatprep.subr.mxu0 0.0
      %405 = vmatpush1.msra.mxu0 0.0
      %406 = vmatprep.subr.mxu0 0.0
      %407 = vmatpush1.msra.mxu0 0.0
      %408 = vmatprep.subr.mxu0 0.0
      %409 = vmatpush1.msra.mxu0 0.0
      %410 = vmatprep.subr.mxu0 0.0
      %411 = vmatpush1.msra.mxu0 0.0
      %412 = vmatprep.subr.mxu0 0.0
      %413 = vmatpush1.msra.mxu0 0.0
      %414 = vmatprep.subr.mxu0 0.0
      %415 = vmatpush1.msra.mxu0 0.0
      %416 = vmatprep.subr.mxu0 0.0
      %417 = vmatpush1.msra.mxu0 0.0
      %418 = vmatprep.subr.mxu0 0.0
      %419 = vmatpush1.msra.mxu0 0.0
      %420 = vmatprep.subr.mxu0 0.0
      %421 = vmatpush1.msra.mxu0 0.0
      %422 = vmatprep.subr.mxu0 0.0
      %423 = vmatpush1.msra.mxu0 0.0
      %424 = vmatprep.subr.mxu0 0.0
      %425 = vmatpush1.msra.mxu0 0.0
      %426 = vmatprep.subr.mxu0 0.0
      %427 = vmatpush1.msra.mxu0 0.0
      %428 = vmatprep.subr.mxu0 0.0
      %429 = vmatpush1.msra.mxu0 0.0
      %430 = vmatprep.subr.mxu0 0.0
      %431 = vmatpush1.msra.mxu0 0.0
      %432 = vmatprep.subr.mxu0 0.0
      %433 = vmatpush1.msra.mxu0 0.0
      %434 = vmatprep.subr.mxu0 0.0
      %435 = vmatpush1.msra.mxu0 0.0
      %436 = vmatprep.subr.mxu0 0.0
      %437 = vmatpush1.msra.mxu0 0.0
      %438 = vmatprep.subr.mxu0 0.0
      %439 = vmatpush1.msra.mxu0 0.0
      %440 = vmatprep.subr.mxu0 0.0
      %441 = vmatpush1.msra.mxu0 0.0
      %442 = vmatprep.subr.mxu0 0.0
      %443 = vmatpush1.msra.mxu0 0.0
      %444 = vmatprep.subr.mxu0 0.0
      %445 = vmatpush1.msra.mxu0 0.0
      %446 = vmatprep.subr.mxu0 0.0
      %447 = vmatpush1.msra.mxu0 0.0
      %448 = vmatprep.subr.mxu0 0.0
      %449 = vmatpush1.msra.mxu0 0.0
      %450 = vmatprep.subr.mxu0 0.0
      %451 = vmatpush1.msra.mxu0 0.0
      %452 = vmatprep.subr.mxu0 0.0
      %453 = vmatpush1.msra.mxu0 0.0
      %454 = vmatprep.subr.mxu0 0.0
      %455 = vmatpush1.msra.mxu0 0.0
      %456 = vmatprep.mubr.f32.mxu0 0.0
      %457 = vmatmul.mubr.f32.gmra.mrb[0].mxu0 %v381
      %v458 = vpop.f32.mrb[0].mxu0
      %v459 = vadd.f32 %v362, %v458
      %v460 = vpop.f32.mrb[0].mxu0
      %461 = vmatprep.mubr.f32.mxu0 0.0
      %462 = vmatmul.mubr.f32.gmra.mrb[0].mxu0 %v384
      %v463 = vpop.f32.mrb[0].mxu0
      %v464 = vadd.f32 %v367, %v463
      %v465 = vpop.f32.mrb[0].mxu0
      %466 = vmatprep.mubr.f32.mxu0 0.0
      %467 = vmatmul.mubr.f32.gmra.mrb[0].mxu0 %v387
      %v468 = vpop.f32.mrb[0].mxu0
      %v469 = vadd.f32 %v372, %v468
      %v470 = vpop.f32.mrb[0].mxu0
      %471 = vmatprep.mubr.f32.mxu0 0.0
      %472 = vmatmul.mubr.f32.gmra.mrb[0].mxu0 %v390
      %v473 = vpop.f32.mrb[0].mxu0
      %v474 = vadd.f32 %v377, %v473
      %v475 = vpop.f32.mrb[0].mxu0
      %476 = vdwg.mxu0
      %vm477 = vcmask 64512
      %478 = vst.msk [vmem:[%s197] sm:$0xff] %vm477, %v459
      %479 = vst.msk [vmem:[%s197 + $0x8] sm:$0xff] %vm477, %v464
      %480 = vst.msk [vmem:[%s197 + $0x10] sm:$0xff] %vm477, %v469
      %481 = vst.msk [vmem:[%s197 + $0x18] sm:$0xff] %vm477, %v474
      %p482 = scmp.lt.s32.totalorder %s15, 1
      %s483 = scalar_select %p482, %s15, 1
      %s484 = smul.addr %s483, 4
      %s485 = smul.addr %s484, 8
      %s486 = scalar_lea.vmem %s4, %s485
      // Predicated region
      $region37: #{tpu_custom_call.1} parent=35 // pred_check
        %p487 = pneg %p122
      $region38: #{tpu_custom_call.1} parent=35 // pred_check_branch
        %489 = sbr.rel (%p487) target = $region40
      $region39: #{tpu_custom_call.1} parent=35 // pred_region
        _
      $region40: #{tpu_custom_call.1} parent=35 // pred_fallthru
        _
    $region36: #{tpu_custom_call.1} parent=5 // pred_fallthru
      _
    %p490 = scmp.le.s32.totalorder 2, %s10
    // Predicated region
    $region41: #{tpu_custom_call.1} parent=5 // pred_check
      %p491 = pneg %p490
    $region42: #{tpu_custom_call.1} parent=5 // pred_check_branch
      %493 = sbr.rel (%p491) target = $region44
    $region43: #{tpu_custom_call.1} parent=5 // pred_region
      %s494 = ssub.s32 %s10, 2
      // Predicated region
      $region45: #{tpu_custom_call.1} parent=43 // pred_check
        %p495 = pneg %p128
      $region46: #{tpu_custom_call.1} parent=43 // pred_check_branch
        %497 = sbr.rel (%p495) target = $region48
      $region47: #{tpu_custom_call.1} parent=43 // pred_region
        %p498 = scmp.lt.s32.totalorder %s16, 1
        %s499 = scalar_select %p498, %s16, 1
        %s500 = smul.addr %s499, 4
        %s501 = smul.addr %s500, 8
        %s502 = scalar_lea.vmem %s4, %s501
      $region48: #{tpu_custom_call.1} parent=43 // pred_fallthru
        _
    $region44: #{tpu_custom_call.1} parent=5 // pred_fallthru
      _
  $region6: #{tpu_custom_call.1} parent=0 // loop_footer
    %s14 = sadd.s32 1, %s10
  $region7: #{tpu_custom_call.1} parent=0 // loop_footer_branch
    %9 = sbr.rel target = $region3
  $region8: #{tpu_custom_call.1} parent=0 // loop_exit
    _

</llo_original>
